<compile_context>
chip_gen: v6e
topology: v6e:2x2x1
jax: 0.10.0
libtpu: 0.0.40
codegen_flags: <defaults>
</compile_context>

<pallas_src>
import math
import functools

import jax
import jax.numpy as jnp
from jax.experimental import pallas as pl
from jax.experimental.pallas import tpu as pltpu

EPS = 1e-5


def _rmsnorm(x, w):
    # x: (S, D) fp32, w: (1, D) fp32
    ms = jnp.mean(x * x, axis=-1, keepdims=True)
    return x * jax.lax.rsqrt(ms + EPS) * w


def _block_kernel(x_ref, ln1_ref, wqkv_ref, wo_ref, ln2_ref, w1_ref, w2_ref,
                  o_ref, *, num_heads):
    f32, bf16 = jnp.float32, jnp.bfloat16
    x = x_ref[0].astype(f32)                               # (S, D)
    S, D = x.shape
    H = num_heads
    hd = D // H

    # ---------------- attention sublayer: x + Wo(MHA(RMSNorm(x))) ----------------
    h1 = _rmsnorm(x, ln1_ref[...]).astype(bf16)            # (S, D)
    # One fused MXU matmul for Q|K|V; 1/sqrt(hd) already folded into the Q columns.
    qkv = jnp.dot(h1, wqkv_ref[...], preferred_element_type=f32)       # (S, 3D)

    def heads(base):
        # Gather per-head lane slices onto a leading batch axis: (H, S, hd).
        return jnp.stack(
            [qkv[:, base + hh * hd: base + (hh + 1) * hd] for hh in range(H)],
            axis=0).astype(bf16)

    q, k, v = heads(0), heads(D), heads(2 * D)

    # Batched-head attention: scores contract on the last dim of both operands
    # (no explicit transpose), heads are a leading batch dim.
    s = jnp.einsum("hqe,hke->hqk", q, k, preferred_element_type=f32)   # (H, S, S)
    row = jax.lax.broadcasted_iota(jnp.int32, (1, S, S), 1)
    col = jax.lax.broadcasted_iota(jnp.int32, (1, S, S), 2)
    s = jnp.where(col <= row, s, jnp.float32(-1e30))       # finite mask: no inf-inf NaN risk
    m = jnp.max(s, axis=-1, keepdims=True)
    p = jnp.exp(s - m)
    denom = jnp.sum(p, axis=-1, keepdims=True)             # >= 1 (diagonal always unmasked)
    o = jnp.einsum("hqk,hke->hqe", p.astype(bf16), v, preferred_element_type=f32)
    # Normalize after the PV matmul (S*hd multiplies instead of S*S); EUP reciprocal.
    o = o * pl.reciprocal(denom, approx=True)              # (H, S, hd)

    attn = jnp.concatenate([o[hh] for hh in range(H)], axis=-1)        # (S, D)
    x = x + jnp.dot(attn.astype(bf16), wo_ref[...], preferred_element_type=f32)

    # ---------------- FFN sublayer: x + W2(gelu(W1(RMSNorm(x)))) ----------------
    h2 = _rmsnorm(x, ln2_ref[...]).astype(bf16)
    ff = jnp.dot(h2, w1_ref[...], preferred_element_type=f32)          # (S, d_ff)
    # tanh-approximate GELU (runs on the EUP). Switch back to the erf form if
    # exact parity with nn.GELU() (erf) is required.
    c = math.sqrt(2.0 / math.pi)
    ff = 0.5 * ff * (1.0 + jnp.tanh(c * (ff + 0.044715 * ff * ff * ff)))
    ff = jnp.dot(ff.astype(bf16), w2_ref[...], preferred_element_type=f32)
    x = x + ff

    o_ref[0] = x.astype(o_ref.dtype)


def prepare_block_params(params, num_heads):
    """One-time weight prep (do NOT repeat per forward call):
    transpose PyTorch (out,in) weights to (in,out), fuse Wq|Wk|Wv, fold the
    1/sqrt(head_dim) scale into Q, and cast matmul weights to bfloat16."""
    D = params["q_proj"].shape[0]
    hd = D // num_heads
    scale = 1.0 / math.sqrt(hd)
    wq = params["q_proj"].T.astype(jnp.float32) * scale
    wk = params["k_proj"].T.astype(jnp.float32)
    wv = params["v_proj"].T.astype(jnp.float32)
    return {
        "ln1": params["ln1"].reshape(1, D).astype(jnp.float32),
        "ln2": params["ln2"].reshape(1, D).astype(jnp.float32),
        "wqkv": jnp.concatenate([wq, wk, wv], axis=1).astype(jnp.bfloat16),  # (D, 3D)
        "wo": params["output_proj"].T.astype(jnp.bfloat16),                  # (D, D)
        "w1": params["w1"].T.astype(jnp.bfloat16),                           # (D, d_ff)
        "w2": params["w2"].T.astype(jnp.bfloat16),                           # (d_ff, D)
    }


def _vmem_limit_bytes():
    # Raise the scoped VMEM limit toward physical capacity (defaults are only
    # 16/32 MiB on v5e/v6e) so fully-resident weights are not rejected early.
    try:
        return int(pltpu.get_tpu_info().vmem_capacity_bytes * 0.9)
    except Exception:
        return 64 * 1024 * 1024


def _build_block_call(B, S, D, d_ff, num_heads, out_dtype, *, single_buffer_weights):
    const = lambda b: (0, 0)
    if single_buffer_weights:
        # Weights/LN gains are identical for every grid step -> single-buffer them
        # (halves weight VMEM vs. the default double buffering).
        wspec = lambda shape: pl.BlockSpec(shape, const, pipeline_mode=pl.Buffered(1))
    else:
        wspec = lambda shape: pl.BlockSpec(shape, const)

    kernel = functools.partial(_block_kernel, num_heads=num_heads)
    return pl.pallas_call(
        kernel,
        out_shape=jax.ShapeDtypeStruct((B, S, D), out_dtype),
        grid_spec=pltpu.PrefetchScalarGridSpec(
            num_scalar_prefetch=0,
            grid=(B,),
            in_specs=[
                pl.BlockSpec((1, S, D), lambda b: (b, 0, 0)),   # x (per-batch block)
                wspec((1, D)),                                  # ln1 weight
                wspec((D, 3 * D)),                              # fused Wqkv (Q pre-scaled)
                wspec((D, D)),                                  # Wo
                wspec((1, D)),                                  # ln2 weight
                wspec((D, d_ff)),                               # W1
                wspec((d_ff, D)),                               # W2
            ],
            out_specs=pl.BlockSpec((1, S, D), lambda b: (b, 0, 0)),
        ),
        compiler_params=pltpu.CompilerParams(
            dimension_semantics=("parallel",),
            vmem_limit_bytes=_vmem_limit_bytes(),
        ),
    )


def transformer_block(x, prepared, num_heads):
    B, S, D = x.shape
    d_ff = prepared["w1"].shape[1]
    args = (x, prepared["ln1"], prepared["wqkv"], prepared["wo"],
            prepared["ln2"], prepared["w1"], prepared["w2"])
    try:
        return _build_block_call(B, S, D, d_ff, num_heads, x.dtype,
                                 single_buffer_weights=True)(*args)
    except Exception:
        # pl.Buffered(1) not supported by this jax/Mosaic version -> fall back to
        # the default (double-buffered) weight pipeline; kernel body is identical.
        return _build_block_call(B, S, D, d_ff, num_heads, x.dtype,
                                 single_buffer_weights=False)(*args)


# ------------------------ pure-JAX reference (for checking) ------------------------
def reference_block(x, params, num_heads):
    B, S, D = x.shape
    hd = D // num_heads

    def rms(v, w):
        return v * jax.lax.rsqrt(jnp.mean(v * v, axis=-1, keepdims=True) + EPS) * w

    h = rms(x, params["ln1"])
    q = h @ params["q_proj"].T
    k = h @ params["k_proj"].T
    v = h @ params["v_proj"].T
    q = q.reshape(B, S, num_heads, hd).transpose(0, 2, 1, 3)
    k = k.reshape(B, S, num_heads, hd).transpose(0, 2, 1, 3)
    v = v.reshape(B, S, num_heads, hd).transpose(0, 2, 1, 3)
    s = jnp.einsum("bhqd,bhkd->bhqk", q, k) / math.sqrt(hd)
    mask = jnp.tril(jnp.ones((S, S), dtype=bool))
    s = jnp.where(mask, s, -jnp.inf)
    p = jax.nn.softmax(s, axis=-1)
    o = jnp.einsum("bhqk,bhkd->bhqd", p, v).transpose(0, 2, 1, 3).reshape(B, S, D)
    x = x + o @ params["output_proj"].T

    h2 = rms(x, params["ln2"])
    ff = h2 @ params["w1"].T
    ff = 0.5 * ff * (1.0 + jax.lax.erf(ff / math.sqrt(2.0)))
    x = x + ff @ params["w2"].T
    return x


if __name__ == "__main__":
    B, S, D, NH, DFF = 2, 8, 32, 4, 64

    key = jax.random.PRNGKey(0)
    keys = jax.random.split(key, 8)
    params = {
        "ln1": jnp.ones((D,), jnp.float32),
        "ln2": jnp.ones((D,), jnp.float32),
        "q_proj": 0.02 * jax.random.normal(keys[0], (D, D), jnp.float32),
        "k_proj": 0.02 * jax.random.normal(keys[1], (D, D), jnp.float32),
        "v_proj": 0.02 * jax.random.normal(keys[2], (D, D), jnp.float32),
        "output_proj": 0.02 * jax.random.normal(keys[3], (D, D), jnp.float32),
        "w1": 0.02 * jax.random.normal(keys[4], (DFF, D), jnp.float32),
        "w2": 0.02 * jax.random.normal(keys[5], (D, DFF), jnp.float32),
    }
    x = jax.random.normal(keys[6], (B, S, D), jnp.float32)

    prepared = prepare_block_params(params, NH)           # one-time weight prep
    out = jax.block_until_ready(transformer_block(x, prepared, NH))

    ref = jax.block_until_ready(reference_block(x, params, NH))
    max_err = float(jnp.max(jnp.abs(out - ref)))
    assert out.shape == (B, S, D)
    assert max_err < 2e-2, f"mismatch vs reference: {max_err}"

    print("KERNEL_OK")
</pallas_src>

<mosaic_0001>
module attributes {stable_mosaic.version = 11 : i64} {
  func.func @_block_kernel(%arg0: i32, %arg1: memref<1x8x32xf32, #tpu.memory_space<vmem>>, %arg2: memref<1x32xf32, #tpu.memory_space<vmem>>, %arg3: memref<32x96xbf16, #tpu.memory_space<vmem>>, %arg4: memref<32x32xbf16, #tpu.memory_space<vmem>>, %arg5: memref<1x32xf32, #tpu.memory_space<vmem>>, %arg6: memref<32x64xbf16, #tpu.memory_space<vmem>>, %arg7: memref<64x32xbf16, #tpu.memory_space<vmem>>, %arg8: memref<1x8x32xf32, #tpu.memory_space<vmem>>) attributes {dimension_semantics = [#tpu.dimension_semantics<parallel>], iteration_bounds = array<i64: 2>, scalar_prefetch = 0 : i64, scratch_operands = 0 : i64, tpu.core_type = #tpu.core_type<tc>, window_params = [{transform_indices = @transform_0, window_bounds = array<i64: 1, 8, 32>}, {pipeline_mode = #tpu.pipeline_mode<synchronous>, transform_indices = @transform_1, window_bounds = array<i64: 1, 32>}, {pipeline_mode = #tpu.pipeline_mode<synchronous>, transform_indices = @transform_2, window_bounds = array<i64: 32, 96>}, {pipeline_mode = #tpu.pipeline_mode<synchronous>, transform_indices = @transform_3, window_bounds = array<i64: 32, 32>}, {pipeline_mode = #tpu.pipeline_mode<synchronous>, transform_indices = @transform_4, window_bounds = array<i64: 1, 32>}, {pipeline_mode = #tpu.pipeline_mode<synchronous>, transform_indices = @transform_5, window_bounds = array<i64: 32, 64>}, {pipeline_mode = #tpu.pipeline_mode<synchronous>, transform_indices = @transform_6, window_bounds = array<i64: 64, 32>}, {transform_indices = @transform_7, window_bounds = array<i64: 1, 8, 32>}]} {
    %c0 = arith.constant 0 : index
    %c0_0 = arith.constant 0 : index
    %c0_1 = arith.constant 0 : index
    %0 = vector.load %arg1[%c0, %c0_0, %c0_1] : memref<1x8x32xf32, #tpu.memory_space<vmem>>, vector<1x8x32xf32>
    %1 = vector.shape_cast %0 : vector<1x8x32xf32> to vector<8x32xf32>
    %c0_2 = arith.constant 0 : index
    %c0_3 = arith.constant 0 : index
    %2 = vector.load %arg2[%c0_2, %c0_3] : memref<1x32xf32, #tpu.memory_space<vmem>>, vector<1x32xf32>
    %3 = arith.mulf %1, %1 : vector<8x32xf32>
    %cst = arith.constant dense<0.000000e+00> : vector<8xf32>
    %4 = vector.multi_reduction <add>, %3, %cst [1] : vector<8x32xf32> to vector<8xf32>
    %5 = vector.shape_cast %4 : vector<8xf32> to vector<8x1xf32>
    %cst_4 = arith.constant 3.200000e+01 : f32
    %6 = vector.broadcast %cst_4 : f32 to vector<8x1xf32>
    %7 = arith.divf %5, %6 : vector<8x1xf32>
    %cst_5 = arith.constant 9.99999974E-6 : f32
    %8 = vector.broadcast %cst_5 : f32 to vector<8x1xf32>
    %9 = arith.addf %7, %8 : vector<8x1xf32>
    %10 = math.rsqrt %9 : vector<8x1xf32>
    %11 = vector.broadcast %10 : vector<8x1xf32> to vector<8x32xf32>
    %12 = arith.mulf %1, %11 : vector<8x32xf32>
    %13 = vector.broadcast %2 : vector<1x32xf32> to vector<8x32xf32>
    %14 = arith.mulf %12, %13 : vector<8x32xf32>
    %15 = arith.truncf %14 : vector<8x32xf32> to vector<8x32xbf16>
    %c0_6 = arith.constant 0 : index
    %c0_7 = arith.constant 0 : index
    %16 = vector.load %arg3[%c0_6, %c0_7] : memref<32x96xbf16, #tpu.memory_space<vmem>>, vector<32x96xbf16>
    %cst_8 = arith.constant dense<0.000000e+00> : vector<8x96xf32>
    %17 = tpu.matmul %15, %16, %cst_8 {dimension_numbers = #tpu.dot_dimension_numbers<[1], [0], [0], [1], [0, 0, 1, 1], [], []>} : vector<8x32xbf16>, vector<32x96xbf16>, vector<8x96xf32> -> vector<8x96xf32>
    %18 = vector.extract_strided_slice %17 {offsets = [0, 0], sizes = [8, 8], strides = [1, 1]} : vector<8x96xf32> to vector<8x8xf32>
    %19 = vector.extract_strided_slice %17 {offsets = [0, 8], sizes = [8, 8], strides = [1, 1]} : vector<8x96xf32> to vector<8x8xf32>
    %20 = vector.extract_strided_slice %17 {offsets = [0, 16], sizes = [8, 8], strides = [1, 1]} : vector<8x96xf32> to vector<8x8xf32>
    %21 = vector.extract_strided_slice %17 {offsets = [0, 24], sizes = [8, 8], strides = [1, 1]} : vector<8x96xf32> to vector<8x8xf32>
    %22 = vector.shape_cast %18 : vector<8x8xf32> to vector<1x8x8xf32>
    %23 = vector.shape_cast %19 : vector<8x8xf32> to vector<1x8x8xf32>
    %24 = vector.shape_cast %20 : vector<8x8xf32> to vector<1x8x8xf32>
    %25 = vector.shape_cast %21 : vector<8x8xf32> to vector<1x8x8xf32>
    %26 = tpu.concatenate %22, %23, %24, %25 in 0 : vector<1x8x8xf32>, vector<1x8x8xf32>, vector<1x8x8xf32>, vector<1x8x8xf32> -> vector<4x8x8xf32>
    %27 = arith.truncf %26 : vector<4x8x8xf32> to vector<4x8x8xbf16>
    %28 = vector.extract_strided_slice %17 {offsets = [0, 32], sizes = [8, 8], strides = [1, 1]} : vector<8x96xf32> to vector<8x8xf32>
    %29 = vector.extract_strided_slice %17 {offsets = [0, 40], sizes = [8, 8], strides = [1, 1]} : vector<8x96xf32> to vector<8x8xf32>
    %30 = vector.extract_strided_slice %17 {offsets = [0, 48], sizes = [8, 8], strides = [1, 1]} : vector<8x96xf32> to vector<8x8xf32>
    %31 = vector.extract_strided_slice %17 {offsets = [0, 56], sizes = [8, 8], strides = [1, 1]} : vector<8x96xf32> to vector<8x8xf32>
    %32 = vector.shape_cast %28 : vector<8x8xf32> to vector<1x8x8xf32>
    %33 = vector.shape_cast %29 : vector<8x8xf32> to vector<1x8x8xf32>
    %34 = vector.shape_cast %30 : vector<8x8xf32> to vector<1x8x8xf32>
    %35 = vector.shape_cast %31 : vector<8x8xf32> to vector<1x8x8xf32>
    %36 = tpu.concatenate %32, %33, %34, %35 in 0 : vector<1x8x8xf32>, vector<1x8x8xf32>, vector<1x8x8xf32>, vector<1x8x8xf32> -> vector<4x8x8xf32>
    %37 = arith.truncf %36 : vector<4x8x8xf32> to vector<4x8x8xbf16>
    %38 = vector.extract_strided_slice %17 {offsets = [0, 64], sizes = [8, 8], strides = [1, 1]} : vector<8x96xf32> to vector<8x8xf32>
    %39 = vector.extract_strided_slice %17 {offsets = [0, 72], sizes = [8, 8], strides = [1, 1]} : vector<8x96xf32> to vector<8x8xf32>
    %40 = vector.extract_strided_slice %17 {offsets = [0, 80], sizes = [8, 8], strides = [1, 1]} : vector<8x96xf32> to vector<8x8xf32>
    %41 = vector.extract_strided_slice %17 {offsets = [0, 88], sizes = [8, 8], strides = [1, 1]} : vector<8x96xf32> to vector<8x8xf32>
    %42 = vector.shape_cast %38 : vector<8x8xf32> to vector<1x8x8xf32>
    %43 = vector.shape_cast %39 : vector<8x8xf32> to vector<1x8x8xf32>
    %44 = vector.shape_cast %40 : vector<8x8xf32> to vector<1x8x8xf32>
    %45 = vector.shape_cast %41 : vector<8x8xf32> to vector<1x8x8xf32>
    %46 = tpu.concatenate %42, %43, %44, %45 in 0 : vector<1x8x8xf32>, vector<1x8x8xf32>, vector<1x8x8xf32>, vector<1x8x8xf32> -> vector<4x8x8xf32>
    %47 = arith.truncf %46 : vector<4x8x8xf32> to vector<4x8x8xbf16>
    "tpu.trace_start"() <{level = 10 : i32, message = "hqe,hke->hqk"}> : () -> ()
    %cst_9 = arith.constant dense<0.000000e+00> : vector<4x8x8xf32>
    %48 = tpu.matmul %27, %37, %cst_9 {dimension_numbers = #tpu.dot_dimension_numbers<[2], [2], [1], [1], [0, 0, 0, 1, 1, 1], [0], [0]>} : vector<4x8x8xbf16>, vector<4x8x8xbf16>, vector<4x8x8xf32> -> vector<4x8x8xf32>
    "tpu.trace_stop"() : () -> ()
    %49 = tpu.iota {dimensions = array<i32: 1>} : vector<1x8x8xi32>
    %50 = tpu.iota {dimensions = array<i32: 2>} : vector<1x8x8xi32>
    %51 = arith.cmpi sle, %50, %49 : vector<1x8x8xi32>
    %cst_10 = arith.constant -1.000000e+30 : f32
    %52 = vector.shape_cast %51 : vector<1x8x8xi1> to vector<1x8x8xi1>
    %53 = vector.broadcast %52 : vector<1x8x8xi1> to vector<4x8x8xi1>
    %54 = vector.broadcast %cst_10 : f32 to vector<4x8x8xf32>
    %55 = arith.select %53, %48, %54 : vector<4x8x8xi1>, vector<4x8x8xf32>
    %cst_11 = arith.constant dense<0xFF800000> : vector<4x8xf32>
    %56 = vector.multi_reduction <maximumf>, %55, %cst_11 [2] : vector<4x8x8xf32> to vector<4x8xf32>
    %57 = vector.shape_cast %56 : vector<4x8xf32> to vector<4x8x1xf32>
    %58 = vector.broadcast %57 : vector<4x8x1xf32> to vector<4x8x8xf32>
    %59 = arith.subf %55, %58 : vector<4x8x8xf32>
    %60 = math.exp %59 : vector<4x8x8xf32>
    %cst_12 = arith.constant dense<0.000000e+00> : vector<4x8xf32>
    %61 = vector.multi_reduction <add>, %60, %cst_12 [2] : vector<4x8x8xf32> to vector<4x8xf32>
    %62 = vector.shape_cast %61 : vector<4x8xf32> to vector<4x8x1xf32>
    %63 = arith.truncf %60 : vector<4x8x8xf32> to vector<4x8x8xbf16>
    "tpu.trace_start"() <{level = 10 : i32, message = "hqk,hke->hqe"}> : () -> ()
    %cst_13 = arith.constant dense<0.000000e+00> : vector<4x8x8xf32>
    %64 = tpu.matmul %63, %47, %cst_13 {dimension_numbers = #tpu.dot_dimension_numbers<[2], [1], [1], [2], [0, 0, 0, 1, 1, 2], [0], [0]>} : vector<4x8x8xbf16>, vector<4x8x8xbf16>, vector<4x8x8xf32> -> vector<4x8x8xf32>
    "tpu.trace_stop"() : () -> ()
    %65 = tpu.reciprocal %62 {approx = true} : vector<4x8x1xf32> -> vector<4x8x1xf32>
    %66 = vector.broadcast %65 : vector<4x8x1xf32> to vector<4x8x8xf32>
    %67 = arith.mulf %64, %66 : vector<4x8x8xf32>
    %68 = vector.extract_strided_slice %67 {offsets = [0, 0, 0], sizes = [1, 8, 8], strides = [1, 1, 1]} : vector<4x8x8xf32> to vector<1x8x8xf32>
    %69 = vector.shape_cast %68 : vector<1x8x8xf32> to vector<8x8xf32>
    %70 = vector.extract_strided_slice %67 {offsets = [1, 0, 0], sizes = [1, 8, 8], strides = [1, 1, 1]} : vector<4x8x8xf32> to vector<1x8x8xf32>
    %71 = vector.shape_cast %70 : vector<1x8x8xf32> to vector<8x8xf32>
    %72 = vector.extract_strided_slice %67 {offsets = [2, 0, 0], sizes = [1, 8, 8], strides = [1, 1, 1]} : vector<4x8x8xf32> to vector<1x8x8xf32>
    %73 = vector.shape_cast %72 : vector<1x8x8xf32> to vector<8x8xf32>
    %74 = vector.extract_strided_slice %67 {offsets = [3, 0, 0], sizes = [1, 8, 8], strides = [1, 1, 1]} : vector<4x8x8xf32> to vector<1x8x8xf32>
    %75 = vector.shape_cast %74 : vector<1x8x8xf32> to vector<8x8xf32>
    %76 = tpu.concatenate %69, %71, %73, %75 in 1 : vector<8x8xf32>, vector<8x8xf32>, vector<8x8xf32>, vector<8x8xf32> -> vector<8x32xf32>
    %77 = arith.truncf %76 : vector<8x32xf32> to vector<8x32xbf16>
    %c0_14 = arith.constant 0 : index
    %c0_15 = arith.constant 0 : index
    %78 = vector.load %arg4[%c0_14, %c0_15] : memref<32x32xbf16, #tpu.memory_space<vmem>>, vector<32x32xbf16>
    %cst_16 = arith.constant dense<0.000000e+00> : vector<8x32xf32>
    %79 = tpu.matmul %77, %78, %cst_16 {dimension_numbers = #tpu.dot_dimension_numbers<[1], [0], [0], [1], [0, 0, 1, 1], [], []>} : vector<8x32xbf16>, vector<32x32xbf16>, vector<8x32xf32> -> vector<8x32xf32>
    %80 = arith.addf %1, %79 : vector<8x32xf32>
    %c0_17 = arith.constant 0 : index
    %c0_18 = arith.constant 0 : index
    %81 = vector.load %arg5[%c0_17, %c0_18] : memref<1x32xf32, #tpu.memory_space<vmem>>, vector<1x32xf32>
    %82 = arith.mulf %80, %80 : vector<8x32xf32>
    %cst_19 = arith.constant dense<0.000000e+00> : vector<8xf32>
    %83 = vector.multi_reduction <add>, %82, %cst_19 [1] : vector<8x32xf32> to vector<8xf32>
    %84 = vector.shape_cast %83 : vector<8xf32> to vector<8x1xf32>
    %cst_20 = arith.constant 3.200000e+01 : f32
    %85 = vector.broadcast %cst_20 : f32 to vector<8x1xf32>
    %86 = arith.divf %84, %85 : vector<8x1xf32>
    %cst_21 = arith.constant 9.99999974E-6 : f32
    %87 = vector.broadcast %cst_21 : f32 to vector<8x1xf32>
    %88 = arith.addf %86, %87 : vector<8x1xf32>
    %89 = math.rsqrt %88 : vector<8x1xf32>
    %90 = vector.broadcast %89 : vector<8x1xf32> to vector<8x32xf32>
    %91 = arith.mulf %80, %90 : vector<8x32xf32>
    %92 = vector.broadcast %81 : vector<1x32xf32> to vector<8x32xf32>
    %93 = arith.mulf %91, %92 : vector<8x32xf32>
    %94 = arith.truncf %93 : vector<8x32xf32> to vector<8x32xbf16>
    %c0_22 = arith.constant 0 : index
    %c0_23 = arith.constant 0 : index
    %95 = vector.load %arg6[%c0_22, %c0_23] : memref<32x64xbf16, #tpu.memory_space<vmem>>, vector<32x64xbf16>
    %cst_24 = arith.constant dense<0.000000e+00> : vector<8x64xf32>
    %96 = tpu.matmul %94, %95, %cst_24 {dimension_numbers = #tpu.dot_dimension_numbers<[1], [0], [0], [1], [0, 0, 1, 1], [], []>} : vector<8x32xbf16>, vector<32x64xbf16>, vector<8x64xf32> -> vector<8x64xf32>
    %cst_25 = arith.constant 5.000000e-01 : f32
    %97 = vector.broadcast %cst_25 : f32 to vector<8x64xf32>
    %98 = arith.mulf %97, %96 : vector<8x64xf32>
    %cst_26 = arith.constant 4.471500e-02 : f32
    %99 = vector.broadcast %cst_26 : f32 to vector<8x64xf32>
    %100 = arith.mulf %99, %96 : vector<8x64xf32>
    %101 = arith.mulf %100, %96 : vector<8x64xf32>
    %102 = arith.mulf %101, %96 : vector<8x64xf32>
    %103 = arith.addf %96, %102 : vector<8x64xf32>
    %cst_27 = arith.constant 0.797884583 : f32
    %104 = vector.broadcast %cst_27 : f32 to vector<8x64xf32>
    %105 = arith.mulf %104, %103 : vector<8x64xf32>
    %106 = math.tanh %105 : vector<8x64xf32>
    %cst_28 = arith.constant 1.000000e+00 : f32
    %107 = vector.broadcast %cst_28 : f32 to vector<8x64xf32>
    %108 = arith.addf %107, %106 : vector<8x64xf32>
    %109 = arith.mulf %98, %108 : vector<8x64xf32>
    %110 = arith.truncf %109 : vector<8x64xf32> to vector<8x64xbf16>
    %c0_29 = arith.constant 0 : index
    %c0_30 = arith.constant 0 : index
    %111 = vector.load %arg7[%c0_29, %c0_30] : memref<64x32xbf16, #tpu.memory_space<vmem>>, vector<64x32xbf16>
    %cst_31 = arith.constant dense<0.000000e+00> : vector<8x32xf32>
    %112 = tpu.matmul %110, %111, %cst_31 {dimension_numbers = #tpu.dot_dimension_numbers<[1], [0], [0], [1], [0, 0, 1, 1], [], []>} : vector<8x64xbf16>, vector<64x32xbf16>, vector<8x32xf32> -> vector<8x32xf32>
    %113 = arith.addf %80, %112 : vector<8x32xf32>
    %c0_32 = arith.constant 0 : index
    %c0_33 = arith.constant 0 : index
    %c0_34 = arith.constant 0 : index
    %114 = vector.load %arg8[%c0_32, %c0_33, %c0_34] : memref<1x8x32xf32, #tpu.memory_space<vmem>>, vector<1x8x32xf32>
    %115 = vector.shape_cast %114 : vector<1x8x32xf32> to vector<8x32xf32>
    %116 = vector.shape_cast %113 : vector<8x32xf32> to vector<1x8x32xf32>
    tpu.vector_store %arg8[%c0_32, %c0_33, %c0_34], %116 {strides = array<i32>} : memref<1x8x32xf32, #tpu.memory_space<vmem>>, vector<1x8x32xf32>,
    return
  }
  func.func @transform_0(%arg0: i32) -> (i32, i32, i32) {
    %c0_i32 = arith.constant 0 : i32
    %c0_i32_0 = arith.constant 0 : i32
    %c0_i32_1 = arith.constant 0 : i32
    return %arg0, %c0_i32, %c0_i32_0 : i32, i32, i32
  }
  func.func @transform_1(%arg0: i32) -> (i32, i32) {
    %c0_i32 = arith.constant 0 : i32
    %c0_i32_0 = arith.constant 0 : i32
    %c0_i32_1 = arith.constant 0 : i32
    return %c0_i32, %c0_i32_0 : i32, i32
  }
  func.func @transform_2(%arg0: i32) -> (i32, i32) {
    %c0_i32 = arith.constant 0 : i32
    %c0_i32_0 = arith.constant 0 : i32
    %c0_i32_1 = arith.constant 0 : i32
    return %c0_i32, %c0_i32_0 : i32, i32
  }
  func.func @transform_3(%arg0: i32) -> (i32, i32) {
    %c0_i32 = arith.constant 0 : i32
    %c0_i32_0 = arith.constant 0 : i32
    %c0_i32_1 = arith.constant 0 : i32
    return %c0_i32, %c0_i32_0 : i32, i32
  }
  func.func @transform_4(%arg0: i32) -> (i32, i32) {
    %c0_i32 = arith.constant 0 : i32
    %c0_i32_0 = arith.constant 0 : i32
    %c0_i32_1 = arith.constant 0 : i32
    return %c0_i32, %c0_i32_0 : i32, i32
  }
  func.func @transform_5(%arg0: i32) -> (i32, i32) {
    %c0_i32 = arith.constant 0 : i32
    %c0_i32_0 = arith.constant 0 : i32
    %c0_i32_1 = arith.constant 0 : i32
    return %c0_i32, %c0_i32_0 : i32, i32
  }
  func.func @transform_6(%arg0: i32) -> (i32, i32) {
    %c0_i32 = arith.constant 0 : i32
    %c0_i32_0 = arith.constant 0 : i32
    %c0_i32_1 = arith.constant 0 : i32
    return %c0_i32, %c0_i32_0 : i32, i32
  }
  func.func @transform_7(%arg0: i32) -> (i32, i32, i32) {
    %c0_i32 = arith.constant 0 : i32
    %c0_i32_0 = arith.constant 0 : i32
    %c0_i32_1 = arith.constant 0 : i32
    return %arg0, %c0_i32, %c0_i32_0 : i32, i32, i32
  }
}

module attributes {stable_mosaic.version = 11 : i64} {
  func.func @_block_kernel(%arg0: i32, %arg1: memref<1x8x32xf32, #tpu.memory_space<vmem>>, %arg2: memref<1x32xf32, #tpu.memory_space<vmem>>, %arg3: memref<32x96xbf16, #tpu.memory_space<vmem>>, %arg4: memref<32x32xbf16, #tpu.memory_space<vmem>>, %arg5: memref<1x32xf32, #tpu.memory_space<vmem>>, %arg6: memref<32x64xbf16, #tpu.memory_space<vmem>>, %arg7: memref<64x32xbf16, #tpu.memory_space<vmem>>, %arg8: memref<1x8x32xf32, #tpu.memory_space<vmem>>) attributes {dimension_semantics = [#tpu.dimension_semantics<parallel>], iteration_bounds = array<i64: 2>, scalar_prefetch = 0 : i64, scratch_operands = 0 : i64, tpu.core_type = #tpu.core_type<tc>, window_params = [{transform_indices = @transform_0, window_bounds = array<i64: 1, 8, 32>}, {pipeline_mode = #tpu.pipeline_mode<synchronous>, transform_indices = @transform_1, window_bounds = array<i64: 1, 32>}, {pipeline_mode = #tpu.pipeline_mode<synchronous>, transform_indices = @transform_2, window_bounds = array<i64: 32, 96>}, {pipeline_mode = #tpu.pipeline_mode<synchronous>, transform_indices = @transform_3, window_bounds = array<i64: 32, 32>}, {pipeline_mode = #tpu.pipeline_mode<synchronous>, transform_indices = @transform_4, window_bounds = array<i64: 1, 32>}, {pipeline_mode = #tpu.pipeline_mode<synchronous>, transform_indices = @transform_5, window_bounds = array<i64: 32, 64>}, {pipeline_mode = #tpu.pipeline_mode<synchronous>, transform_indices = @transform_6, window_bounds = array<i64: 64, 32>}, {transform_indices = @transform_7, window_bounds = array<i64: 1, 8, 32>}]} {
    %c0 = arith.constant 0 : index
    %c0_0 = arith.constant 0 : index
    %c0_1 = arith.constant 0 : index
    %0 = vector.load %arg1[%c0, %c0_0, %c0_1] : memref<1x8x32xf32, #tpu.memory_space<vmem>>, vector<1x8x32xf32>
    %1 = vector.shape_cast %0 : vector<1x8x32xf32> to vector<8x32xf32>
    %c0_2 = arith.constant 0 : index
    %c0_3 = arith.constant 0 : index
    %2 = vector.load %arg2[%c0_2, %c0_3] : memref<1x32xf32, #tpu.memory_space<vmem>>, vector<1x32xf32>
    %3 = arith.mulf %1, %1 : vector<8x32xf32>
    %cst = arith.constant dense<0.000000e+00> : vector<8xf32>
    %4 = vector.multi_reduction <add>, %3, %cst [1] : vector<8x32xf32> to vector<8xf32>
    %5 = vector.shape_cast %4 : vector<8xf32> to vector<8x1xf32>
    %cst_4 = arith.constant 3.200000e+01 : f32
    %6 = vector.broadcast %cst_4 : f32 to vector<8x1xf32>
    %7 = arith.divf %5, %6 : vector<8x1xf32>
    %cst_5 = arith.constant 9.99999974E-6 : f32
    %8 = vector.broadcast %cst_5 : f32 to vector<8x1xf32>
    %9 = arith.addf %7, %8 : vector<8x1xf32>
    %10 = math.rsqrt %9 : vector<8x1xf32>
    %11 = vector.broadcast %10 : vector<8x1xf32> to vector<8x32xf32>
    %12 = arith.mulf %1, %11 : vector<8x32xf32>
    %13 = vector.broadcast %2 : vector<1x32xf32> to vector<8x32xf32>
    %14 = arith.mulf %12, %13 : vector<8x32xf32>
    %15 = arith.truncf %14 : vector<8x32xf32> to vector<8x32xbf16>
    %c0_6 = arith.constant 0 : index
    %c0_7 = arith.constant 0 : index
    %16 = vector.load %arg3[%c0_6, %c0_7] : memref<32x96xbf16, #tpu.memory_space<vmem>>, vector<32x96xbf16>
    %cst_8 = arith.constant dense<0.000000e+00> : vector<8x96xf32>
    %17 = tpu.matmul %15, %16, %cst_8 {dimension_numbers = #tpu.dot_dimension_numbers<[1], [0], [0], [1], [0, 0, 1, 1], [], []>} : vector<8x32xbf16>, vector<32x96xbf16>, vector<8x96xf32> -> vector<8x96xf32>
    %18 = vector.extract_strided_slice %17 {offsets = [0, 0], sizes = [8, 8], strides = [1, 1]} : vector<8x96xf32> to vector<8x8xf32>
    %19 = vector.extract_strided_slice %17 {offsets = [0, 8], sizes = [8, 8], strides = [1, 1]} : vector<8x96xf32> to vector<8x8xf32>
    %20 = vector.extract_strided_slice %17 {offsets = [0, 16], sizes = [8, 8], strides = [1, 1]} : vector<8x96xf32> to vector<8x8xf32>
    %21 = vector.extract_strided_slice %17 {offsets = [0, 24], sizes = [8, 8], strides = [1, 1]} : vector<8x96xf32> to vector<8x8xf32>
    %22 = vector.shape_cast %18 : vector<8x8xf32> to vector<1x8x8xf32>
    %23 = vector.shape_cast %19 : vector<8x8xf32> to vector<1x8x8xf32>
    %24 = vector.shape_cast %20 : vector<8x8xf32> to vector<1x8x8xf32>
    %25 = vector.shape_cast %21 : vector<8x8xf32> to vector<1x8x8xf32>
    %26 = tpu.concatenate %22, %23, %24, %25 in 0 : vector<1x8x8xf32>, vector<1x8x8xf32>, vector<1x8x8xf32>, vector<1x8x8xf32> -> vector<4x8x8xf32>
    %27 = arith.truncf %26 : vector<4x8x8xf32> to vector<4x8x8xbf16>
    %28 = vector.extract_strided_slice %17 {offsets = [0, 32], sizes = [8, 8], strides = [1, 1]} : vector<8x96xf32> to vector<8x8xf32>
    %29 = vector.extract_strided_slice %17 {offsets = [0, 40], sizes = [8, 8], strides = [1, 1]} : vector<8x96xf32> to vector<8x8xf32>
    %30 = vector.extract_strided_slice %17 {offsets = [0, 48], sizes = [8, 8], strides = [1, 1]} : vector<8x96xf32> to vector<8x8xf32>
    %31 = vector.extract_strided_slice %17 {offsets = [0, 56], sizes = [8, 8], strides = [1, 1]} : vector<8x96xf32> to vector<8x8xf32>
    %32 = vector.shape_cast %28 : vector<8x8xf32> to vector<1x8x8xf32>
    %33 = vector.shape_cast %29 : vector<8x8xf32> to vector<1x8x8xf32>
    %34 = vector.shape_cast %30 : vector<8x8xf32> to vector<1x8x8xf32>
    %35 = vector.shape_cast %31 : vector<8x8xf32> to vector<1x8x8xf32>
    %36 = tpu.concatenate %32, %33, %34, %35 in 0 : vector<1x8x8xf32>, vector<1x8x8xf32>, vector<1x8x8xf32>, vector<1x8x8xf32> -> vector<4x8x8xf32>
    %37 = arith.truncf %36 : vector<4x8x8xf32> to vector<4x8x8xbf16>
    %38 = vector.extract_strided_slice %17 {offsets = [0, 64], sizes = [8, 8], strides = [1, 1]} : vector<8x96xf32> to vector<8x8xf32>
    %39 = vector.extract_strided_slice %17 {offsets = [0, 72], sizes = [8, 8], strides = [1, 1]} : vector<8x96xf32> to vector<8x8xf32>
    %40 = vector.extract_strided_slice %17 {offsets = [0, 80], sizes = [8, 8], strides = [1, 1]} : vector<8x96xf32> to vector<8x8xf32>
    %41 = vector.extract_strided_slice %17 {offsets = [0, 88], sizes = [8, 8], strides = [1, 1]} : vector<8x96xf32> to vector<8x8xf32>
    %42 = vector.shape_cast %38 : vector<8x8xf32> to vector<1x8x8xf32>
    %43 = vector.shape_cast %39 : vector<8x8xf32> to vector<1x8x8xf32>
    %44 = vector.shape_cast %40 : vector<8x8xf32> to vector<1x8x8xf32>
    %45 = vector.shape_cast %41 : vector<8x8xf32> to vector<1x8x8xf32>
    %46 = tpu.concatenate %42, %43, %44, %45 in 0 : vector<1x8x8xf32>, vector<1x8x8xf32>, vector<1x8x8xf32>, vector<1x8x8xf32> -> vector<4x8x8xf32>
    %47 = arith.truncf %46 : vector<4x8x8xf32> to vector<4x8x8xbf16>
    "tpu.trace_start"() <{level = 10 : i32, message = "hqe,hke->hqk"}> : () -> ()
    %cst_9 = arith.constant dense<0.000000e+00> : vector<4x8x8xf32>
    %48 = tpu.matmul %27, %37, %cst_9 {dimension_numbers = #tpu.dot_dimension_numbers<[2], [2], [1], [1], [0, 0, 0, 1, 1, 1], [0], [0]>} : vector<4x8x8xbf16>, vector<4x8x8xbf16>, vector<4x8x8xf32> -> vector<4x8x8xf32>
    "tpu.trace_stop"() : () -> ()
    %49 = tpu.iota {dimensions = array<i32: 1>} : vector<1x8x8xi32>
    %50 = tpu.iota {dimensions = array<i32: 2>} : vector<1x8x8xi32>
    %51 = arith.cmpi sle, %50, %49 : vector<1x8x8xi32>
    %cst_10 = arith.constant -1.000000e+30 : f32
    %52 = vector.shape_cast %51 : vector<1x8x8xi1> to vector<1x8x8xi1>
    %53 = vector.broadcast %52 : vector<1x8x8xi1> to vector<4x8x8xi1>
    %54 = vector.broadcast %cst_10 : f32 to vector<4x8x8xf32>
    %55 = arith.select %53, %48, %54 : vector<4x8x8xi1>, vector<4x8x8xf32>
    %cst_11 = arith.constant dense<0xFF800000> : vector<4x8xf32>
    %56 = vector.multi_reduction <maximumf>, %55, %cst_11 [2] : vector<4x8x8xf32> to vector<4x8xf32>
    %57 = vector.shape_cast %56 : vector<4x8xf32> to vector<4x8x1xf32>
    %58 = vector.broadcast %57 : vector<4x8x1xf32> to vector<4x8x8xf32>
    %59 = arith.subf %55, %58 : vector<4x8x8xf32>
    %60 = math.exp %59 : vector<4x8x8xf32>
    %cst_12 = arith.constant dense<0.000000e+00> : vector<4x8xf32>
    %61 = vector.multi_reduction <add>, %60, %cst_12 [2] : vector<4x8x8xf32> to vector<4x8xf32>
    %62 = vector.shape_cast %61 : vector<4x8xf32> to vector<4x8x1xf32>
    %63 = arith.truncf %60 : vector<4x8x8xf32> to vector<4x8x8xbf16>
    "tpu.trace_start"() <{level = 10 : i32, message = "hqk,hke->hqe"}> : () -> ()
    %cst_13 = arith.constant dense<0.000000e+00> : vector<4x8x8xf32>
    %64 = tpu.matmul %63, %47, %cst_13 {dimension_numbers = #tpu.dot_dimension_numbers<[2], [1], [1], [2], [0, 0, 0, 1, 1, 2], [0], [0]>} : vector<4x8x8xbf16>, vector<4x8x8xbf16>, vector<4x8x8xf32> -> vector<4x8x8xf32>
    "tpu.trace_stop"() : () -> ()
    %65 = tpu.reciprocal %62 {approx = true} : vector<4x8x1xf32> -> vector<4x8x1xf32>
    %66 = vector.broadcast %65 : vector<4x8x1xf32> to vector<4x8x8xf32>
    %67 = arith.mulf %64, %66 : vector<4x8x8xf32>
    %68 = vector.extract_strided_slice %67 {offsets = [0, 0, 0], sizes = [1, 8, 8], strides = [1, 1, 1]} : vector<4x8x8xf32> to vector<1x8x8xf32>
    %69 = vector.shape_cast %68 : vector<1x8x8xf32> to vector<8x8xf32>
    %70 = vector.extract_strided_slice %67 {offsets = [1, 0, 0], sizes = [1, 8, 8], strides = [1, 1, 1]} : vector<4x8x8xf32> to vector<1x8x8xf32>
    %71 = vector.shape_cast %70 : vector<1x8x8xf32> to vector<8x8xf32>
    %72 = vector.extract_strided_slice %67 {offsets = [2, 0, 0], sizes = [1, 8, 8], strides = [1, 1, 1]} : vector<4x8x8xf32> to vector<1x8x8xf32>
    %73 = vector.shape_cast %72 : vector<1x8x8xf32> to vector<8x8xf32>
    %74 = vector.extract_strided_slice %67 {offsets = [3, 0, 0], sizes = [1, 8, 8], strides = [1, 1, 1]} : vector<4x8x8xf32> to vector<1x8x8xf32>
    %75 = vector.shape_cast %74 : vector<1x8x8xf32> to vector<8x8xf32>
    %76 = tpu.concatenate %69, %71, %73, %75 in 1 : vector<8x8xf32>, vector<8x8xf32>, vector<8x8xf32>, vector<8x8xf32> -> vector<8x32xf32>
    %77 = arith.truncf %76 : vector<8x32xf32> to vector<8x32xbf16>
    %c0_14 = arith.constant 0 : index
    %c0_15 = arith.constant 0 : index
    %78 = vector.load %arg4[%c0_14, %c0_15] : memref<32x32xbf16, #tpu.memory_space<vmem>>, vector<32x32xbf16>
    %cst_16 = arith.constant dense<0.000000e+00> : vector<8x32xf32>
    %79 = tpu.matmul %77, %78, %cst_16 {dimension_numbers = #tpu.dot_dimension_numbers<[1], [0], [0], [1], [0, 0, 1, 1], [], []>} : vector<8x32xbf16>, vector<32x32xbf16>, vector<8x32xf32> -> vector<8x32xf32>
    %80 = arith.addf %1, %79 : vector<8x32xf32>
    %c0_17 = arith.constant 0 : index
    %c0_18 = arith.constant 0 : index
    %81 = vector.load %arg5[%c0_17, %c0_18] : memref<1x32xf32, #tpu.memory_space<vmem>>, vector<1x32xf32>
    %82 = arith.mulf %80, %80 : vector<8x32xf32>
    %cst_19 = arith.constant dense<0.000000e+00> : vector<8xf32>
    %83 = vector.multi_reduction <add>, %82, %cst_19 [1] : vector<8x32xf32> to vector<8xf32>
    %84 = vector.shape_cast %83 : vector<8xf32> to vector<8x1xf32>
    %cst_20 = arith.constant 3.200000e+01 : f32
    %85 = vector.broadcast %cst_20 : f32 to vector<8x1xf32>
    %86 = arith.divf %84, %85 : vector<8x1xf32>
    %cst_21 = arith.constant 9.99999974E-6 : f32
    %87 = vector.broadcast %cst_21 : f32 to vector<8x1xf32>
    %88 = arith.addf %86, %87 : vector<8x1xf32>
    %89 = math.rsqrt %88 : vector<8x1xf32>
    %90 = vector.broadcast %89 : vector<8x1xf32> to vector<8x32xf32>
    %91 = arith.mulf %80, %90 : vector<8x32xf32>
    %92 = vector.broadcast %81 : vector<1x32xf32> to vector<8x32xf32>
    %93 = arith.mulf %91, %92 : vector<8x32xf32>
    %94 = arith.truncf %93 : vector<8x32xf32> to vector<8x32xbf16>
    %c0_22 = arith.constant 0 : index
    %c0_23 = arith.constant 0 : index
    %95 = vector.load %arg6[%c0_22, %c0_23] : memref<32x64xbf16, #tpu.memory_space<vmem>>, vector<32x64xbf16>
    %cst_24 = arith.constant dense<0.000000e+00> : vector<8x64xf32>
    %96 = tpu.matmul %94, %95, %cst_24 {dimension_numbers = #tpu.dot_dimension_numbers<[1], [0], [0], [1], [0, 0, 1, 1], [], []>} : vector<8x32xbf16>, vector<32x64xbf16>, vector<8x64xf32> -> vector<8x64xf32>
    %cst_25 = arith.constant 5.000000e-01 : f32
    %97 = vector.broadcast %cst_25 : f32 to vector<8x64xf32>
    %98 = arith.mulf %97, %96 : vector<8x64xf32>
    %cst_26 = arith.constant 4.471500e-02 : f32
    %99 = vector.broadcast %cst_26 : f32 to vector<8x64xf32>
    %100 = arith.mulf %99, %96 : vector<8x64xf32>
    %101 = arith.mulf %100, %96 : vector<8x64xf32>
    %102 = arith.mulf %101, %96 : vector<8x64xf32>
    %103 = arith.addf %96, %102 : vector<8x64xf32>
    %cst_27 = arith.constant 0.797884583 : f32
    %104 = vector.broadcast %cst_27 : f32 to vector<8x64xf32>
    %105 = arith.mulf %104, %103 : vector<8x64xf32>
    %106 = math.tanh %105 : vector<8x64xf32>
    %cst_28 = arith.constant 1.000000e+00 : f32
    %107 = vector.broadcast %cst_28 : f32 to vector<8x64xf32>
    %108 = arith.addf %107, %106 : vector<8x64xf32>
    %109 = arith.mulf %98, %108 : vector<8x64xf32>
    %110 = arith.truncf %109 : vector<8x64xf32> to vector<8x64xbf16>
    %c0_29 = arith.constant 0 : index
    %c0_30 = arith.constant 0 : index
    %111 = vector.load %arg7[%c0_29, %c0_30] : memref<64x32xbf16, #tpu.memory_space<vmem>>, vector<64x32xbf16>
    %cst_31 = arith.constant dense<0.000000e+00> : vector<8x32xf32>
    %112 = tpu.matmul %110, %111, %cst_31 {dimension_numbers = #tpu.dot_dimension_numbers<[1], [0], [0], [1], [0, 0, 1, 1], [], []>} : vector<8x64xbf16>, vector<64x32xbf16>, vector<8x32xf32> -> vector<8x32xf32>
    %113 = arith.addf %80, %112 : vector<8x32xf32>
    %c0_32 = arith.constant 0 : index
    %c0_33 = arith.constant 0 : index
    %c0_34 = arith.constant 0 : index
    %114 = vector.load %arg8[%c0_32, %c0_33, %c0_34] : memref<1x8x32xf32, #tpu.memory_space<vmem>>, vector<1x8x32xf32>
    %115 = vector.shape_cast %114 : vector<1x8x32xf32> to vector<8x32xf32>
    %116 = vector.shape_cast %113 : vector<8x32xf32> to vector<1x8x32xf32>
    tpu.vector_store %arg8[%c0_32, %c0_33, %c0_34], %116 {strides = array<i32>} : memref<1x8x32xf32, #tpu.memory_space<vmem>>, vector<1x8x32xf32>,
    return
  }
  func.func @transform_0(%arg0: i32) -> (i32, i32, i32) {
    %c0_i32 = arith.constant 0 : i32
    %c0_i32_0 = arith.constant 0 : i32
    %c0_i32_1 = arith.constant 0 : i32
    return %arg0, %c0_i32, %c0_i32_0 : i32, i32, i32
  }
  func.func @transform_1(%arg0: i32) -> (i32, i32) {
    %c0_i32 = arith.constant 0 : i32
    %c0_i32_0 = arith.constant 0 : i32
    %c0_i32_1 = arith.constant 0 : i32
    return %c0_i32, %c0_i32_0 : i32, i32
  }
  func.func @transform_2(%arg0: i32) -> (i32, i32) {
    %c0_i32 = arith.constant 0 : i32
    %c0_i32_0 = arith.constant 0 : i32
    %c0_i32_1 = arith.constant 0 : i32
    return %c0_i32, %c0_i32_0 : i32, i32
  }
  func.func @transform_3(%arg0: i32) -> (i32, i32) {
    %c0_i32 = arith.constant 0 : i32
    %c0_i32_0 = arith.constant 0 : i32
    %c0_i32_1 = arith.constant 0 : i32
    return %c0_i32, %c0_i32_0 : i32, i32
  }
  func.func @transform_4(%arg0: i32) -> (i32, i32) {
    %c0_i32 = arith.constant 0 : i32
    %c0_i32_0 = arith.constant 0 : i32
    %c0_i32_1 = arith.constant 0 : i32
    return %c0_i32, %c0_i32_0 : i32, i32
  }
  func.func @transform_5(%arg0: i32) -> (i32, i32) {
    %c0_i32 = arith.constant 0 : i32
    %c0_i32_0 = arith.constant 0 : i32
    %c0_i32_1 = arith.constant 0 : i32
    return %c0_i32, %c0_i32_0 : i32, i32
  }
  func.func @transform_6(%arg0: i32) -> (i32, i32) {
    %c0_i32 = arith.constant 0 : i32
    %c0_i32_0 = arith.constant 0 : i32
    %c0_i32_1 = arith.constant 0 : i32
    return %c0_i32, %c0_i32_0 : i32, i32
  }
  func.func @transform_7(%arg0: i32) -> (i32, i32, i32) {
    %c0_i32 = arith.constant 0 : i32
    %c0_i32_0 = arith.constant 0 : i32
    %c0_i32_1 = arith.constant 0 : i32
    return %arg0, %c0_i32, %c0_i32_0 : i32, i32, i32
  }
}

</mosaic_0001>

<llo_original>
// kernel: tpu_custom_call.1
$region0: #{tpu_custom_call.1}
  #allocation0 [shape = 'u32[]', space=smem, size = 0x4, offset = 0x4, fixed_abs, tag = 'smem constant byte address 0x4 - core index']
  #allocation1 [shape = 'u32[144,128]{1,0:T(1,128)}', space=vmem, size = 0x12000, scoped, tag = 'internal scratch']
  %s0 = inlined_call_operand.vmem [shape: f32[2,8,32], index: 0, kind: input, shape index: {}]
  %s1 = inlined_call_operand.vmem [shape: f32[1,32], index: 1, kind: input, shape index: {}]
  %s2 = inlined_call_operand.vmem [shape: bf16[32,96], index: 2, kind: input, shape index: {}]
  %s3 = inlined_call_operand.vmem [shape: bf16[32,32], index: 3, kind: input, shape index: {}]
  %s4 = inlined_call_operand.vmem [shape: f32[1,32], index: 4, kind: input, shape index: {}]
  %s5 = inlined_call_operand.hbm [shape: bf16[32,64], index: 5, kind: input, shape index: {}]
  %s6 = inlined_call_operand.vmem [shape: bf16[64,32], index: 6, kind: input, shape index: {}]
  %s7 = inlined_call_operand.hbm [shape: f32[2,8,32], index: 7, kind: output, shape index: {}]
  %s8 = sld [smem:[#allocation0]]
  $region65: #{tpu_custom_call.1} parent=0
    _
  %s10 = ssub.s32 1, %s8
  %s11 = scalar_select 0, %s10, %s8
  $region1: #{tpu_custom_call.1} parent=0
    #allocation2 [shape = 'u8[8192]{0}', space=vmem, size = 0x2000, scoped, tag = 'input window, operand 5, single buffered']
    #allocation3 [shape = 's32[2]{0}', space=sflag, size = 0x8, scoped, tag = 'scoped memory for tpu_custom_call.1']
    #allocation4 [shape = 's32[2]{0}', space=sflag, size = 0x8, scoped, tag = 'scoped memory for tpu_custom_call.1']
    #allocation5 [shape = 'u8[8192]{0}', space=vmem, size = 0x2000, scoped, tag = 'output window, operand 0']
    %12 = vsyncpa [#allocation3], 0
    %13 = vsyncpa [#allocation4], 0
    %s14 = scalar_lea.sflag [#allocation4], 1
    %15 = vsyncpa %s14, 0
    loop: start=0, step=1, limit=4
    $region2: #{tpu_custom_call.1} parent=1 // loop_pre_header
      _
    $region3: #{tpu_custom_call.1} parent=1 // loop_header
      %s17 = sphi 0, %s21
      %p18 = scmp.ge.s32.totalorder %s17, 4
      %s27 = sphi 0, %s29
      %s30 = sphi 0, %s27
      %s31 = sphi 0, %s30
      %s47 = sphi 0, %s31
      %s51 = sphi 0, %s51
      %s53 = sphi 0, %s51
      %s54 = sphi 0, %s53
      %s68 = sphi 0, %s54
      %s72 = sphi 0, %s72
      %s74 = sphi 0, %s72
      %s75 = sphi 0, %s74
      %s89 = sphi 0, %s75
      %s93 = sphi 0, %s93
      %s95 = sphi 0, %s93
      %s96 = sphi 0, %s95
      %s110 = sphi 0, %s96
      %s114 = sphi 0, %s114
      %s116 = sphi 0, %s114
      %s117 = sphi 0, %s116
      %s131 = sphi 0, %s117
      %s135 = sphi 0, %s135
      %s137 = sphi 0, %s135
      %s138 = sphi 0, %s137
      %s152 = sphi 0, %s138
      %s156 = sphi 0, %s156
      %s158 = sphi 0, %s156
      %s159 = sphi 0, %s158
      %s173 = sphi 0, %s159
      %s179 = sphi 0, %s181
      %s182 = sphi 0, %s179
      %s183 = sphi 0, %s182
      %s199 = sphi 0, %s183
    $region4: #{tpu_custom_call.1} parent=1 // loop_header_branch
      %20 = sbr.rel (%p18) target = $region8
    $region5: #{tpu_custom_call.1} parent=1 // loop_body
      %s22 = ssub.s32 %s17, 1
      %s23 = ssub.s32 %s17, 2
      %s24 = sadd.s32 %s17, 1
      %s25 = ssub.s32 %s17, %s24
      %p26 = scmp.eq.s32.totalorder %s25, 0
      %s28 = sadd.s32 %s27, 1
      %s29 = scalar_select %p26, %s27, %s28
      %p32 = pneg %p26
      %p33 = scmp.eq.s32.totalorder %s17, 1
      %p34 = por %p32, %p33
      %p35 = scmp.ne.s32.totalorder %s27, %s30
      %p36 = scmp.eq.s32.totalorder %s17, 0
      %p37 = por %p35, %p36
      %p38 = scmp.ne.s32.totalorder %s27, %s30
      %p39 = scmp.eq.s32.totalorder %s22, 1
      %p40 = por %p38, %p39
      %p41 = scmp.ne.s32.totalorder %s30, %s31
      %p42 = scmp.eq.s32.totalorder %s22, 0
      %p43 = por %p41, %p42
      %p44 = scmp.ne.s32.totalorder %s30, %s31
      %p45 = scmp.eq.s32.totalorder %s23, 1
      %p46 = por %p44, %p45
      %p48 = scmp.ne.s32.totalorder %s31, %s47
      %p49 = scmp.eq.s32.totalorder %s23, 0
      %p50 = por %p48, %p49
      %s52 = sadd.s32 %s51, 1
      %p55 = scmp.eq.s32.totalorder %s17, 1
      %p56 = scmp.ne.s32.totalorder %s51, %s53
      %p57 = scmp.eq.s32.totalorder %s17, 0
      %p58 = por %p56, %p57
      %p59 = scmp.ne.s32.totalorder %s51, %s53
      %p60 = scmp.eq.s32.totalorder %s22, 1
      %p61 = por %p59, %p60
      %p62 = scmp.ne.s32.totalorder %s53, %s54
      %p63 = scmp.eq.s32.totalorder %s22, 0
      %p64 = por %p62, %p63
      %p65 = scmp.ne.s32.totalorder %s53, %s54
      %p66 = scmp.eq.s32.totalorder %s23, 1
      %p67 = por %p65, %p66
      %p69 = scmp.ne.s32.totalorder %s54, %s68
      %p70 = scmp.eq.s32.totalorder %s23, 0
      %p71 = por %p69, %p70
      %s73 = sadd.s32 %s72, 1
      %p76 = scmp.eq.s32.totalorder %s17, 1
      %p77 = scmp.ne.s32.totalorder %s72, %s74
      %p78 = scmp.eq.s32.totalorder %s17, 0
      %p79 = por %p77, %p78
      %p80 = scmp.ne.s32.totalorder %s72, %s74
      %p81 = scmp.eq.s32.totalorder %s22, 1
      %p82 = por %p80, %p81
      %p83 = scmp.ne.s32.totalorder %s74, %s75
      %p84 = scmp.eq.s32.totalorder %s22, 0
      %p85 = por %p83, %p84
      %p86 = scmp.ne.s32.totalorder %s74, %s75
      %p87 = scmp.eq.s32.totalorder %s23, 1
      %p88 = por %p86, %p87
      %p90 = scmp.ne.s32.totalorder %s75, %s89
      %p91 = scmp.eq.s32.totalorder %s23, 0
      %p92 = por %p90, %p91
      %s94 = sadd.s32 %s93, 1
      %p97 = scmp.eq.s32.totalorder %s17, 1
      %p98 = scmp.ne.s32.totalorder %s93, %s95
      %p99 = scmp.eq.s32.totalorder %s17, 0
      %p100 = por %p98, %p99
      %p101 = scmp.ne.s32.totalorder %s93, %s95
      %p102 = scmp.eq.s32.totalorder %s22, 1
      %p103 = por %p101, %p102
      %p104 = scmp.ne.s32.totalorder %s95, %s96
      %p105 = scmp.eq.s32.totalorder %s22, 0
      %p106 = por %p104, %p105
      %p107 = scmp.ne.s32.totalorder %s95, %s96
      %p108 = scmp.eq.s32.totalorder %s23, 1
      %p109 = por %p107, %p108
      %p111 = scmp.ne.s32.totalorder %s96, %s110
      %p112 = scmp.eq.s32.totalorder %s23, 0
      %p113 = por %p111, %p112
      %s115 = sadd.s32 %s114, 1
      %p118 = scmp.eq.s32.totalorder %s17, 1
      %p119 = scmp.ne.s32.totalorder %s114, %s116
      %p120 = scmp.eq.s32.totalorder %s17, 0
      %p121 = por %p119, %p120
      %p122 = scmp.ne.s32.totalorder %s114, %s116
      %p123 = scmp.eq.s32.totalorder %s22, 1
      %p124 = por %p122, %p123
      %p125 = scmp.ne.s32.totalorder %s116, %s117
      %p126 = scmp.eq.s32.totalorder %s22, 0
      %p127 = por %p125, %p126
      %p128 = scmp.ne.s32.totalorder %s116, %s117
      %p129 = scmp.eq.s32.totalorder %s23, 1
      %p130 = por %p128, %p129
      %p132 = scmp.ne.s32.totalorder %s117, %s131
      %p133 = scmp.eq.s32.totalorder %s23, 0
      %p134 = por %p132, %p133
      %s136 = sadd.s32 %s135, 1
      %p139 = scmp.eq.s32.totalorder %s17, 1
      %p140 = scmp.ne.s32.totalorder %s135, %s137
      %p141 = scmp.eq.s32.totalorder %s17, 0
      %p142 = por %p140, %p141
      %p143 = scmp.ne.s32.totalorder %s135, %s137
      %p144 = scmp.eq.s32.totalorder %s22, 1
      %p145 = por %p143, %p144
      %p146 = scmp.ne.s32.totalorder %s137, %s138
      %p147 = scmp.eq.s32.totalorder %s22, 0
      %p148 = por %p146, %p147
      %p149 = scmp.ne.s32.totalorder %s137, %s138
      %p150 = scmp.eq.s32.totalorder %s23, 1
      %p151 = por %p149, %p150
      %p153 = scmp.ne.s32.totalorder %s138, %s152
      %p154 = scmp.eq.s32.totalorder %s23, 0
      %p155 = por %p153, %p154
      %s157 = sadd.s32 %s156, 1
      %p160 = scmp.eq.s32.totalorder %s17, 1
      %p161 = scmp.ne.s32.totalorder %s156, %s158
      %p162 = scmp.eq.s32.totalorder %s17, 0
      %p163 = por %p161, %p162
      %p164 = scmp.ne.s32.totalorder %s156, %s158
      %p165 = scmp.eq.s32.totalorder %s22, 1
      %p166 = por %p164, %p165
      %p167 = scmp.ne.s32.totalorder %s158, %s159
      %p168 = scmp.eq.s32.totalorder %s22, 0
      %p169 = por %p167, %p168
      %p170 = scmp.ne.s32.totalorder %s158, %s159
      %p171 = scmp.eq.s32.totalorder %s23, 1
      %p172 = por %p170, %p171
      %p174 = scmp.ne.s32.totalorder %s159, %s173
      %p175 = scmp.eq.s32.totalorder %s23, 0
      %p176 = por %p174, %p175
      %s177 = ssub.s32 %s17, %s24
      %p178 = scmp.eq.s32.totalorder %s177, 0
      %s180 = sadd.s32 %s179, 1
      %s181 = scalar_select %p178, %s179, %s180
      %p184 = pneg %p178
      %p185 = scmp.eq.s32.totalorder %s17, 1
      %p186 = por %p184, %p185
      %p187 = scmp.ne.s32.totalorder %s179, %s182
      %p188 = scmp.eq.s32.totalorder %s17, 0
      %p189 = por %p187, %p188
      %p190 = scmp.ne.s32.totalorder %s179, %s182
      %p191 = scmp.eq.s32.totalorder %s22, 1
      %p192 = por %p190, %p191
      %p193 = scmp.ne.s32.totalorder %s182, %s183
      %p194 = scmp.eq.s32.totalorder %s22, 0
      %p195 = por %p193, %p194
      %p196 = scmp.ne.s32.totalorder %s182, %s183
      %p197 = scmp.eq.s32.totalorder %s23, 1
      %p198 = por %p196, %p197
      %p200 = scmp.ne.s32.totalorder %s183, %s199
      %p201 = scmp.eq.s32.totalorder %s23, 0
      %p202 = por %p200, %p201
      %p203 = scmp.le.s32.totalorder 1, %s17
      %p204 = scmp.lt.s32.totalorder %s17, 3
      %p205 = pnand %p203, %p204
      %p206 = pneg %p205
      // Predicated region
      $region9: #{tpu_custom_call.1} parent=5 // pred_check
        _
      $region10: #{tpu_custom_call.1} parent=5 // pred_check_branch
        %208 = sbr.rel (%p205) target = $region12
      $region11: #{tpu_custom_call.1} parent=5 // pred_region
        %s209 = ssub.s32 %s17, 1
        // Predicated region
        $region13: #{tpu_custom_call.1} parent=11 // pred_check
          %p210 = pneg %p64
        $region14: #{tpu_custom_call.1} parent=11 // pred_check_branch
          %212 = sbr.rel (%p210) target = $region16
        $region15: #{tpu_custom_call.1} parent=11 // pred_region
          _
        $region16: #{tpu_custom_call.1} parent=11 // pred_fallthru
          _
        // Predicated region
        $region17: #{tpu_custom_call.1} parent=11 // pred_check
          %p213 = pneg %p85
        $region18: #{tpu_custom_call.1} parent=11 // pred_check_branch
          %215 = sbr.rel (%p213) target = $region20
        $region19: #{tpu_custom_call.1} parent=11 // pred_region
          _
        $region20: #{tpu_custom_call.1} parent=11 // pred_fallthru
          _
        // Predicated region
        $region21: #{tpu_custom_call.1} parent=11 // pred_check
          %p216 = pneg %p106
        $region22: #{tpu_custom_call.1} parent=11 // pred_check_branch
          %218 = sbr.rel (%p216) target = $region24
        $region23: #{tpu_custom_call.1} parent=11 // pred_region
          _
        $region24: #{tpu_custom_call.1} parent=11 // pred_fallthru
          _
        // Predicated region
        $region25: #{tpu_custom_call.1} parent=11 // pred_check
          %p219 = pneg %p127
        $region26: #{tpu_custom_call.1} parent=11 // pred_check_branch
          %221 = sbr.rel (%p219) target = $region28
        $region27: #{tpu_custom_call.1} parent=11 // pred_region
          _
        $region28: #{tpu_custom_call.1} parent=11 // pred_fallthru
          _
        // Predicated region
        $region29: #{tpu_custom_call.1} parent=11 // pred_check
          %p222 = pneg %p148
        $region30: #{tpu_custom_call.1} parent=11 // pred_check_branch
          %224 = sbr.rel (%p222) target = $region32
        $region31: #{tpu_custom_call.1} parent=11 // pred_region
          %s226 = ssub.s32 256, 256
          %227 = vsyncadd [#allocation3], %s226
          %s228 = sshll.u32 [#allocation2], 4
          %s229 = int_to_ptr.vmem [resolvable:$true] %s228
          %234 = dma.hbm_to_vmem [thread:$0]  %s5, 256, %s229, [#allocation3], 64, 64, 4
        $region32: #{tpu_custom_call.1} parent=11 // pred_fallthru
          _
        // Predicated region
        $region33: #{tpu_custom_call.1} parent=11 // pred_check
          %p235 = pneg %p169
        $region34: #{tpu_custom_call.1} parent=11 // pred_check_branch
          %237 = sbr.rel (%p235) target = $region36
        $region35: #{tpu_custom_call.1} parent=11 // pred_region
          _
        $region36: #{tpu_custom_call.1} parent=11 // pred_fallthru
          _
      $region12: #{tpu_custom_call.1} parent=5 // pred_fallthru
        _
      %p238 = scmp.lt.s32.totalorder %s17, 2
      // Predicated region
      $region37: #{tpu_custom_call.1} parent=5 // pred_check
        %p239 = pneg %p238
      $region38: #{tpu_custom_call.1} parent=5 // pred_check_branch
        %241 = sbr.rel (%p239) target = $region40
      $region39: #{tpu_custom_call.1} parent=5 // pred_region
        // Predicated region
        $region41: #{tpu_custom_call.1} parent=39 // pred_check
          %p242 = pneg %p37
        $region42: #{tpu_custom_call.1} parent=39 // pred_check_branch
          %244 = sbr.rel (%p242) target = $region44
        $region43: #{tpu_custom_call.1} parent=39 // pred_region
          %p245 = scmp.lt.s32.totalorder %s17, 1
          %s246 = scalar_select %p245, %s17, 1
          %s247 = smul.addr %s246, 8
          %s248 = scalar_lea.vmem %s0, %s247
        $region44: #{tpu_custom_call.1} parent=39 // pred_fallthru
          _
      $region40: #{tpu_custom_call.1} parent=5 // pred_fallthru
        _
      %p249 = scmp.le.s32.totalorder 1, %s17
      %p250 = scmp.lt.s32.totalorder %s17, 3
      %p251 = pnand %p249, %p250
      %p252 = pneg %p251
      // Predicated region
      $region45: #{tpu_custom_call.1} parent=5 // pred_check
        _
      $region46: #{tpu_custom_call.1} parent=5 // pred_check_branch
        %254 = sbr.rel (%p251) target = $region48
      $region47: #{tpu_custom_call.1} parent=5 // pred_region
        %s255 = ssub.s32 %s17, 1
        // Predicated region
        $region49: #{tpu_custom_call.1} parent=47 // pred_check
          %p256 = pneg %p148
        $region50: #{tpu_custom_call.1} parent=47 // pred_check_branch
          %258 = sbr.rel (%p256) target = $region52
        $region51: #{tpu_custom_call.1} parent=47 // pred_region
          %259 = dma.done [#allocation3], 256
        $region52: #{tpu_custom_call.1} parent=47 // pred_fallthru
          _
        %p260 = scmp.lt.s32.totalorder %s22, 1
        %s261 = scalar_select %p260, %s22, 1
        %s262 = smul.addr %s261, 8
        %s263 = scalar_lea.vmem %s0, %s262
        %p264 = pneg %p43
        %p265 = pneg %p40
        %p266 = pneg %p64
        %p267 = pneg %p61
        %p268 = pneg %p85
        %p269 = pneg %p82
        %p270 = pneg %p106
        %p271 = pneg %p103
        %p272 = pneg %p127
        %p273 = pneg %p124
        %p274 = pneg %p148
        %p275 = pneg %p145
        %p276 = pneg %p169
        %p277 = pneg %p166
        %p278 = pneg %p195
        %p279 = pneg %p192
        %s280 = sand.u32 %s182, 1
        %s281 = scalar_lea.sflag [#allocation4], %s280
        %s282 = sand.u32 %s182, 1
        %s283 = smul.addr %s282, 8
        %s284 = scalar_lea.vmem [#allocation5], %s283
        %p285 = scmp.lt.s32.totalorder %s22, 1
        %s286 = scalar_select %p285, %s22, 1
        %s287 = smul.addr %s286, 8
        %s288 = scalar_lea.vmem %s0, %s287
        %v290 = vld [vmem:[%s288] sm:$0xff]
        %v291 = vld [vmem:[%s1] sm:$0x1]
        %v292 = vmul.f32 %v290, %v290
        %vm293 = vcmask 261120
        %v294 = vsel %vm293, %v292, 0.0
        %295 = vadd.xlane.f32.xlu0 %v294
        %v296 = vpop.xlane.xlu0 %295
        %v297 = vrcp.pop 32.0
        %v298 = vmul.f32 %v296, %v297
        %v299 = vadd.f32 %v298, 1e-05
        %v300 = vrsqrt.pop %v299
        %v301 = vmul.f32 %v290, %v300
        %v303 = vlaneseq
        %v304 = vshrl.u32 %v303, 7
        %v305 = vsub.s32 0, %v304
        %v306 = vrot.slane %v291, %v305
        %v308 = vmul.f32 %v301, %v306
        %v309 = vpack.c.bf16 %v308, %v308
        %v310 = vld [vmem:[%s2] sm:$0xf]
        %v311 = vld [vmem:[%s2 + $0x4] sm:$0xf]
        %v312 = vld [vmem:[%s2 + $0x8] sm:$0xf]
        %v313 = vld [vmem:[%s2 + $0xc] sm:$0xf]
        %v318 = vunpack.c.l.b16 %v310
        %v319 = vunpack.c.l.b16 %v311
        %v320 = vunpack.c.l.b16 %v312
        %v321 = vunpack.c.l.b16 %v313
        %v322 = vpack.c.b16 %v319, %v318
        %v323 = vpack.c.b16 %v321, %v320
        %v327 = vsel %vm293, %v309, 0
        %329 = vmatprep.subr.bf16.mxu0 0
        %330 = vmatpush1.bf16.msra.mxu0 0
        %331 = vmatprep.subr.bf16.mxu0 0
        %332 = vmatpush1.bf16.msra.mxu0 0
        %333 = vmatprep.subr.bf16.mxu0 0
        %334 = vmatpush1.bf16.msra.mxu0 0
        %335 = vmatprep.subr.bf16.mxu0 0
        %336 = vmatpush1.bf16.msra.mxu0 0
        %337 = vmatprep.subr.bf16.mxu0 0
        %338 = vmatpush1.bf16.msra.mxu0 0
        %339 = vmatprep.subr.bf16.mxu0 0
        %340 = vmatpush1.bf16.msra.mxu0 0
        %341 = vmatprep.subr.bf16.mxu0 0
        %342 = vmatpush1.bf16.msra.mxu0 %v323
        %343 = vmatprep.subr.bf16.mxu0 0
        %344 = vmatpush1.bf16.msra.mxu0 %v322
        %345 = vmatprep.subr.bf16.mxu0 0
        %346 = vmatpush2.bf16.msra.mxu0 0
        %347 = vmatprep.subr.bf16.mxu0 0
        %348 = vmatpush2.bf16.msra.mxu0 0
        %349 = vmatprep.subr.bf16.mxu0 0
        %350 = vmatpush2.bf16.msra.mxu0 0
        %351 = vmatprep.subr.bf16.mxu0 0
        %352 = vmatpush2.bf16.msra.mxu0 0
        %353 = vmatprep.subr.bf16.mxu0 0
        %354 = vmatpush2.bf16.msra.mxu0 0
        %355 = vmatprep.subr.bf16.mxu0 0
        %356 = vmatpush2.bf16.msra.mxu0 0
        %357 = vmatprep.subr.bf16.mxu0 0
        %358 = vmatpush2.bf16.msra.mxu0 0
        %359 = vmatprep.subr.bf16.mxu0 0
        %360 = vmatpush2.bf16.msra.mxu0 0
        %361 = vmatprep.mubr.bf16.mxu0 0
        %362 = vmatmul.mubr.bf16.gmra.mxu0 %v327
        %v363 = vpop.f32.mrf.mxu0
        %v364 = vadd.f32 0.0, %v363
        %v365 = vpop.f32.mrf.mxu0
        %v366 = vpop.f32.mrf.mxu0
        %v367 = vpop.f32.mrf.mxu0
        %368 = vdwg.mxu0
        %370 = vrot.lane.b32.xlu0 %v364, 120
        %v371 = vpop.permute.xlu0 %370
        %373 = vrot.lane.b32.xlu0 %v364, 112
        %v374 = vpop.permute.xlu0 %373
        %376 = vrot.lane.b32.xlu0 %v364, 104
        %v377 = vpop.permute.xlu0 %376
        %v379 = vpack.c.bf16 %v364, %v364
        %v380 = vpack.c.bf16 %v371, %v371
        %v381 = vpack.c.bf16 %v374, %v374
        %v382 = vpack.c.bf16 %v377, %v377
        %384 = vrot.lane.b32.xlu0 %v379, 96
        %v385 = vpop.permute.xlu0 %384
        %vm386 = vcmask 64512
        %v388 = vsel %vm386, %v379, 0
        %v391 = vsel %vm386, %v385, 0
        %393 = vmatprep.subr.bf16.mxu0 0
        %394 = vmatpush1.bf16.xpose.msra.mxu0 0
        %395 = vmatprep.subr.bf16.mxu0 0
        %396 = vmatpush1.bf16.xpose.msra.mxu0 0
        %397 = vmatprep.subr.bf16.mxu0 0
        %398 = vmatpush1.bf16.xpose.msra.mxu0 0
        %399 = vmatprep.subr.bf16.mxu0 0
        %400 = vmatpush1.bf16.xpose.msra.mxu0 0
        %401 = vmatprep.subr.bf16.mxu0 0
        %402 = vmatpush1.bf16.xpose.msra.mxu0 0
        %403 = vmatprep.subr.bf16.mxu0 0
        %404 = vmatpush1.bf16.xpose.msra.mxu0 0
        %405 = vmatprep.subr.bf16.mxu0 0
        %406 = vmatpush1.bf16.xpose.msra.mxu0 0
        %407 = vmatprep.subr.bf16.mxu0 0
        %408 = vmatpush1.bf16.xpose.msra.mxu0 %v391
        %409 = vmatprep.subr.bf16.mxu0 0
        %410 = vmatpush2.bf16.xpose.msra.mxu0 0
        %411 = vmatprep.subr.bf16.mxu0 0
        %412 = vmatpush2.bf16.xpose.msra.mxu0 0
        %413 = vmatprep.subr.bf16.mxu0 0
        %414 = vmatpush2.bf16.xpose.msra.mxu0 0
        %415 = vmatprep.subr.bf16.mxu0 0
        %416 = vmatpush2.bf16.xpose.msra.mxu0 0
        %417 = vmatprep.subr.bf16.mxu0 0
        %418 = vmatpush2.bf16.xpose.msra.mxu0 0
        %419 = vmatprep.subr.bf16.mxu0 0
        %420 = vmatpush2.bf16.xpose.msra.mxu0 0
        %421 = vmatprep.subr.bf16.mxu0 0
        %422 = vmatpush2.bf16.xpose.msra.mxu0 0
        %423 = vmatprep.subr.bf16.mxu0 0
        %424 = vmatpush2.bf16.xpose.msra.mxu0 0
        %425 = vmatprep.mubr.bf16.mxu0 0
        %426 = vmatmul.mubr.bf16.gmra.mxu0 %v388
        %v427 = vpop.f32.mrf.mxu0
        %v428 = vadd.f32 0.0, %v427
        %v429 = vpop.f32.mrf.mxu0
        %v430 = vpop.f32.mrf.mxu0
        %v431 = vpop.f32.mrf.mxu0
        %432 = vdwg.mxu0
        %434 = vrot.lane.b32.xlu0 %v380, 96
        %v435 = vpop.permute.xlu0 %434
        %v437 = vsel %vm386, %v380, 0
        %v440 = vsel %vm386, %v435, 0
        %442 = vmatprep.subr.bf16.mxu0 0
        %443 = vmatpush1.bf16.xpose.msra.mxu0 0
        %444 = vmatprep.subr.bf16.mxu0 0
        %445 = vmatpush1.bf16.xpose.msra.mxu0 0
        %446 = vmatprep.subr.bf16.mxu0 0
        %447 = vmatpush1.bf16.xpose.msra.mxu0 0
        %448 = vmatprep.subr.bf16.mxu0 0
        %449 = vmatpush1.bf16.xpose.msra.mxu0 0
        %450 = vmatprep.subr.bf16.mxu0 0
        %451 = vmatpush1.bf16.xpose.msra.mxu0 0
        %452 = vmatprep.subr.bf16.mxu0 0
        %453 = vmatpush1.bf16.xpose.msra.mxu0 0
        %454 = vmatprep.subr.bf16.mxu0 0
        %455 = vmatpush1.bf16.xpose.msra.mxu0 0
        %456 = vmatprep.subr.bf16.mxu0 0
        %457 = vmatpush1.bf16.xpose.msra.mxu0 %v440
        %458 = vmatprep.subr.bf16.mxu0 0
        %459 = vmatpush2.bf16.xpose.msra.mxu0 0
        %460 = vmatprep.subr.bf16.mxu0 0
        %461 = vmatpush2.bf16.xpose.msra.mxu0 0
        %462 = vmatprep.subr.bf16.mxu0 0
        %463 = vmatpush2.bf16.xpose.msra.mxu0 0
        %464 = vmatprep.subr.bf16.mxu0 0
        %465 = vmatpush2.bf16.xpose.msra.mxu0 0
        %466 = vmatprep.subr.bf16.mxu0 0
        %467 = vmatpush2.bf16.xpose.msra.mxu0 0
        %468 = vmatprep.subr.bf16.mxu0 0
        %469 = vmatpush2.bf16.xpose.msra.mxu0 0
        %470 = vmatprep.subr.bf16.mxu0 0
        %471 = vmatpush2.bf16.xpose.msra.mxu0 0
        %472 = vmatprep.subr.bf16.mxu0 0
        %473 = vmatpush2.bf16.xpose.msra.mxu0 0
        %474 = vmatprep.mubr.bf16.mxu0 0
        %475 = vmatmul.mubr.bf16.gmra.mxu0 %v437
        %v476 = vpop.f32.mrf.mxu0
        %v477 = vadd.f32 0.0, %v476
        %v478 = vpop.f32.mrf.mxu0
        %v479 = vpop.f32.mrf.mxu0
        %v480 = vpop.f32.mrf.mxu0
        %481 = vdwg.mxu0
        %483 = vrot.lane.b32.xlu0 %v381, 96
        %v484 = vpop.permute.xlu0 %483
        %v486 = vsel %vm386, %v381, 0
        %v489 = vsel %vm386, %v484, 0
        %491 = vmatprep.subr.bf16.mxu0 0
        %492 = vmatpush1.bf16.xpose.msra.mxu0 0
        %493 = vmatprep.subr.bf16.mxu0 0
        %494 = vmatpush1.bf16.xpose.msra.mxu0 0
        %495 = vmatprep.subr.bf16.mxu0 0
        %496 = vmatpush1.bf16.xpose.msra.mxu0 0
        %497 = vmatprep.subr.bf16.mxu0 0
        %498 = vmatpush1.bf16.xpose.msra.mxu0 0
        %499 = vmatprep.subr.bf16.mxu0 0
        %500 = vmatpush1.bf16.xpose.msra.mxu0 0
        %501 = vmatprep.subr.bf16.mxu0 0
        %502 = vmatpush1.bf16.xpose.msra.mxu0 0
        %503 = vmatprep.subr.bf16.mxu0 0
        %504 = vmatpush1.bf16.xpose.msra.mxu0 0
        %505 = vmatprep.subr.bf16.mxu0 0
        %506 = vmatpush1.bf16.xpose.msra.mxu0 %v489
        %507 = vmatprep.subr.bf16.mxu0 0
        %508 = vmatpush2.bf16.xpose.msra.mxu0 0
        %509 = vmatprep.subr.bf16.mxu0 0
        %510 = vmatpush2.bf16.xpose.msra.mxu0 0
        %511 = vmatprep.subr.bf16.mxu0 0
        %512 = vmatpush2.bf16.xpose.msra.mxu0 0
        %513 = vmatprep.subr.bf16.mxu0 0
        %514 = vmatpush2.bf16.xpose.msra.mxu0 0
        %515 = vmatprep.subr.bf16.mxu0 0
        %516 = vmatpush2.bf16.xpose.msra.mxu0 0
        %517 = vmatprep.subr.bf16.mxu0 0
        %518 = vmatpush2.bf16.xpose.msra.mxu0 0
        %519 = vmatprep.subr.bf16.mxu0 0
        %520 = vmatpush2.bf16.xpose.msra.mxu0 0
        %521 = vmatprep.subr.bf16.mxu0 0
        %522 = vmatpush2.bf16.xpose.msra.mxu0 0
        %523 = vmatprep.mubr.bf16.mxu0 0
        %524 = vmatmul.mubr.bf16.gmra.mxu0 %v486
        %v525 = vpop.f32.mrf.mxu0
        %v526 = vadd.f32 0.0, %v525
        %v527 = vpop.f32.mrf.mxu0
        %v528 = vpop.f32.mrf.mxu0
        %v529 = vpop.f32.mrf.mxu0
        %530 = vdwg.mxu0
        %532 = vrot.lane.b32.xlu0 %v382, 96
        %v533 = vpop.permute.xlu0 %532
        %v535 = vsel %vm386, %v382, 0
        %v538 = vsel %vm386, %v533, 0
        %540 = vmatprep.subr.bf16.mxu0 0
        %541 = vmatpush1.bf16.xpose.msra.mxu0 0
        %542 = vmatprep.subr.bf16.mxu0 0
        %543 = vmatpush1.bf16.xpose.msra.mxu0 0
        %544 = vmatprep.subr.bf16.mxu0 0
        %545 = vmatpush1.bf16.xpose.msra.mxu0 0
        %546 = vmatprep.subr.bf16.mxu0 0
        %547 = vmatpush1.bf16.xpose.msra.mxu0 0
        %548 = vmatprep.subr.bf16.mxu0 0
        %549 = vmatpush1.bf16.xpose.msra.mxu0 0
        %550 = vmatprep.subr.bf16.mxu0 0
        %551 = vmatpush1.bf16.xpose.msra.mxu0 0
        %552 = vmatprep.subr.bf16.mxu0 0
        %553 = vmatpush1.bf16.xpose.msra.mxu0 0
        %554 = vmatprep.subr.bf16.mxu0 0
        %555 = vmatpush1.bf16.xpose.msra.mxu0 %v538
        %556 = vmatprep.subr.bf16.mxu0 0
        %557 = vmatpush2.bf16.xpose.msra.mxu0 0
        %558 = vmatprep.subr.bf16.mxu0 0
        %559 = vmatpush2.bf16.xpose.msra.mxu0 0
        %560 = vmatprep.subr.bf16.mxu0 0
        %561 = vmatpush2.bf16.xpose.msra.mxu0 0
        %562 = vmatprep.subr.bf16.mxu0 0
        %563 = vmatpush2.bf16.xpose.msra.mxu0 0
        %564 = vmatprep.subr.bf16.mxu0 0
        %565 = vmatpush2.bf16.xpose.msra.mxu0 0
        %566 = vmatprep.subr.bf16.mxu0 0
        %567 = vmatpush2.bf16.xpose.msra.mxu0 0
        %568 = vmatprep.subr.bf16.mxu0 0
        %569 = vmatpush2.bf16.xpose.msra.mxu0 0
        %570 = vmatprep.subr.bf16.mxu0 0
        %571 = vmatpush2.bf16.xpose.msra.mxu0 0
        %572 = vmatprep.mubr.bf16.mxu0 0
        %573 = vmatmul.mubr.bf16.gmra.mxu0 %v535
        %v574 = vpop.f32.mrf.mxu0
        %v575 = vadd.f32 0.0, %v574
        %v576 = vpop.f32.mrf.mxu0
        %v577 = vpop.f32.mrf.mxu0
        %v578 = vpop.f32.mrf.mxu0
        %579 = vdwg.mxu0
        %v580 = vlaneseq
        %v581 = vshrl.u32 %v580, 7
        %v582 = vlaneseq
        %v583 = vand.u32 %v582, 127
        %vm584 = vcmp.le.s32.totalorder %v583, %v581
        %v585 = vsel %vm584, 1, 0
        %vm586 = vcmp.eq.s32.totalorder %v585, 1
        %v587 = vsel %vm586, %v428, -1e+30
        %v588 = vsel %vm586, %v477, -1e+30
        %v589 = vsel %vm586, %v526, -1e+30
        %v590 = vsel %vm586, %v575, -1e+30
        %v591 = vsel %vm386, %v587, -inf
        %592 = vmax.xlane.f32.xlu0 %v591
        %v593 = vpop.xlane.xlu0 %592
        %v594 = vsel %vm386, %v588, -inf
        %595 = vmax.xlane.f32.xlu0 %v594
        %v596 = vpop.xlane.xlu0 %595
        %v597 = vsel %vm386, %v589, -inf
        %598 = vmax.xlane.f32.xlu0 %v597
        %v599 = vpop.xlane.xlu0 %598
        %v600 = vsel %vm386, %v590, -inf
        %601 = vmax.xlane.f32.xlu0 %v600
        %v602 = vpop.xlane.xlu0 %601
        %v603 = vsub.f32 %v587, %v593
        %v604 = vsub.f32 %v588, %v596
        %v605 = vsub.f32 %v589, %v599
        %v606 = vsub.f32 %v590, %v602
        %v607 = vmul.f32 %v603, 1.442695
        %v608 = vpow.pop %v607
        %v609 = vmul.f32 %v604, 1.442695
        %v610 = vpow.pop %v609
        %v611 = vmul.f32 %v605, 1.442695
        %v612 = vpow.pop %v611
        %v613 = vmul.f32 %v606, 1.442695
        %v614 = vpow.pop %v613
        %v615 = vsel %vm386, %v608, 0.0
        %616 = vadd.xlane.f32.xlu0 %v615
        %v617 = vpop.xlane.xlu0 %616
        %v618 = vsel %vm386, %v610, 0.0
        %619 = vadd.xlane.f32.xlu0 %v618
        %v620 = vpop.xlane.xlu0 %619
        %v621 = vsel %vm386, %v612, 0.0
        %622 = vadd.xlane.f32.xlu0 %v621
        %v623 = vpop.xlane.xlu0 %622
        %v624 = vsel %vm386, %v614, 0.0
        %625 = vadd.xlane.f32.xlu0 %v624
        %v626 = vpop.xlane.xlu0 %625
        %v627 = vpack.c.bf16 %v608, %v608
        %v628 = vpack.c.bf16 %v610, %v610
        %v629 = vpack.c.bf16 %v612, %v612
        %v630 = vpack.c.bf16 %v614, %v614
        %631 = vrot.lane.b32.xlu0 %v379, 64
        %v632 = vpop.permute.xlu0 %631
        %v634 = vsel %vm386, %v627, 0
        %vm636 = vcmask 1043456
        %v638 = vsel %vm636, %v632, 0
        %640 = vmatprep.subr.bf16.mxu0 0
        %641 = vmatpush1.bf16.msra.mxu0 0
        %642 = vmatprep.subr.bf16.mxu0 0
        %643 = vmatpush1.bf16.msra.mxu0 0
        %644 = vmatprep.subr.bf16.mxu0 0
        %645 = vmatpush1.bf16.msra.mxu0 0
        %646 = vmatprep.subr.bf16.mxu0 0
        %647 = vmatpush1.bf16.msra.mxu0 0
        %648 = vmatprep.subr.bf16.mxu0 0
        %649 = vmatpush1.bf16.msra.mxu0 0
        %650 = vmatprep.subr.bf16.mxu0 0
        %651 = vmatpush1.bf16.msra.mxu0 0
        %652 = vmatprep.subr.bf16.mxu0 0
        %653 = vmatpush1.bf16.msra.mxu0 0
        %654 = vmatprep.subr.bf16.mxu0 0
        %655 = vmatpush1.bf16.msra.mxu0 %v638
        %656 = vmatprep.subr.bf16.mxu0 0
        %657 = vmatpush2.bf16.msra.mxu0 0
        %658 = vmatprep.subr.bf16.mxu0 0
        %659 = vmatpush2.bf16.msra.mxu0 0
        %660 = vmatprep.subr.bf16.mxu0 0
        %661 = vmatpush2.bf16.msra.mxu0 0
        %662 = vmatprep.subr.bf16.mxu0 0
        %663 = vmatpush2.bf16.msra.mxu0 0
        %664 = vmatprep.subr.bf16.mxu0 0
        %665 = vmatpush2.bf16.msra.mxu0 0
        %666 = vmatprep.subr.bf16.mxu0 0
        %667 = vmatpush2.bf16.msra.mxu0 0
        %668 = vmatprep.subr.bf16.mxu0 0
        %669 = vmatpush2.bf16.msra.mxu0 0
        %670 = vmatprep.subr.bf16.mxu0 0
        %671 = vmatpush2.bf16.msra.mxu0 0
        %672 = vmatprep.mubr.bf16.mxu0 0
        %673 = vmatmul.mubr.bf16.gmra.mxu0 %v634
        %v674 = vpop.f32.mrf.mxu0
        %v675 = vadd.f32 0.0, %v674
        %v676 = vpop.f32.mrf.mxu0
        %v677 = vpop.f32.mrf.mxu0
        %v678 = vpop.f32.mrf.mxu0
        %679 = vdwg.mxu0
        %680 = vrot.lane.b32.xlu0 %v380, 64
        %v681 = vpop.permute.xlu0 %680
        %v683 = vsel %vm386, %v628, 0
        %v686 = vsel %vm636, %v681, 0
        %688 = vmatprep.subr.bf16.mxu0 0
        %689 = vmatpush1.bf16.msra.mxu0 0
        %690 = vmatprep.subr.bf16.mxu0 0
        %691 = vmatpush1.bf16.msra.mxu0 0
        %692 = vmatprep.subr.bf16.mxu0 0
        %693 = vmatpush1.bf16.msra.mxu0 0
        %694 = vmatprep.subr.bf16.mxu0 0
        %695 = vmatpush1.bf16.msra.mxu0 0
        %696 = vmatprep.subr.bf16.mxu0 0
        %697 = vmatpush1.bf16.msra.mxu0 0
        %698 = vmatprep.subr.bf16.mxu0 0
        %699 = vmatpush1.bf16.msra.mxu0 0
        %700 = vmatprep.subr.bf16.mxu0 0
        %701 = vmatpush1.bf16.msra.mxu0 0
        %702 = vmatprep.subr.bf16.mxu0 0
        %703 = vmatpush1.bf16.msra.mxu0 %v686
        %704 = vmatprep.subr.bf16.mxu0 0
        %705 = vmatpush2.bf16.msra.mxu0 0
        %706 = vmatprep.subr.bf16.mxu0 0
        %707 = vmatpush2.bf16.msra.mxu0 0
        %708 = vmatprep.subr.bf16.mxu0 0
        %709 = vmatpush2.bf16.msra.mxu0 0
        %710 = vmatprep.subr.bf16.mxu0 0
        %711 = vmatpush2.bf16.msra.mxu0 0
        %712 = vmatprep.subr.bf16.mxu0 0
        %713 = vmatpush2.bf16.msra.mxu0 0
        %714 = vmatprep.subr.bf16.mxu0 0
        %715 = vmatpush2.bf16.msra.mxu0 0
        %716 = vmatprep.subr.bf16.mxu0 0
        %717 = vmatpush2.bf16.msra.mxu0 0
        %718 = vmatprep.subr.bf16.mxu0 0
        %719 = vmatpush2.bf16.msra.mxu0 0
        %720 = vmatprep.mubr.bf16.mxu0 0
        %721 = vmatmul.mubr.bf16.gmra.mxu0 %v683
        %v722 = vpop.f32.mrf.mxu0
        %v723 = vadd.f32 0.0, %v722
        %v724 = vpop.f32.mrf.mxu0
        %v725 = vpop.f32.mrf.mxu0
        %v726 = vpop.f32.mrf.mxu0
        %727 = vdwg.mxu0
        %728 = vrot.lane.b32.xlu0 %v381, 64
        %v729 = vpop.permute.xlu0 %728
        %v731 = vsel %vm386, %v629, 0
        %v734 = vsel %vm636, %v729, 0
        %736 = vmatprep.subr.bf16.mxu0 0
        %737 = vmatpush1.bf16.msra.mxu0 0
        %738 = vmatprep.subr.bf16.mxu0 0
        %739 = vmatpush1.bf16.msra.mxu0 0
        %740 = vmatprep.subr.bf16.mxu0 0
        %741 = vmatpush1.bf16.msra.mxu0 0
        %742 = vmatprep.subr.bf16.mxu0 0
        %743 = vmatpush1.bf16.msra.mxu0 0
        %744 = vmatprep.subr.bf16.mxu0 0
        %745 = vmatpush1.bf16.msra.mxu0 0
        %746 = vmatprep.subr.bf16.mxu0 0
        %747 = vmatpush1.bf16.msra.mxu0 0
        %748 = vmatprep.subr.bf16.mxu0 0
        %749 = vmatpush1.bf16.msra.mxu0 0
        %750 = vmatprep.subr.bf16.mxu0 0
        %751 = vmatpush1.bf16.msra.mxu0 %v734
        %752 = vmatprep.subr.bf16.mxu0 0
        %753 = vmatpush2.bf16.msra.mxu0 0
        %754 = vmatprep.subr.bf16.mxu0 0
        %755 = vmatpush2.bf16.msra.mxu0 0
        %756 = vmatprep.subr.bf16.mxu0 0
        %757 = vmatpush2.bf16.msra.mxu0 0
        %758 = vmatprep.subr.bf16.mxu0 0
        %759 = vmatpush2.bf16.msra.mxu0 0
        %760 = vmatprep.subr.bf16.mxu0 0
        %761 = vmatpush2.bf16.msra.mxu0 0
        %762 = vmatprep.subr.bf16.mxu0 0
        %763 = vmatpush2.bf16.msra.mxu0 0
        %764 = vmatprep.subr.bf16.mxu0 0
        %765 = vmatpush2.bf16.msra.mxu0 0
        %766 = vmatprep.subr.bf16.mxu0 0
        %767 = vmatpush2.bf16.msra.mxu0 0
        %768 = vmatprep.mubr.bf16.mxu0 0
        %769 = vmatmul.mubr.bf16.gmra.mxu0 %v731
        %v770 = vpop.f32.mrf.mxu0
        %v771 = vadd.f32 0.0, %v770
        %v772 = vpop.f32.mrf.mxu0
        %v773 = vpop.f32.mrf.mxu0
        %v774 = vpop.f32.mrf.mxu0
        %775 = vdwg.mxu0
        %776 = vrot.lane.b32.xlu0 %v382, 64
        %v777 = vpop.permute.xlu0 %776
        %v779 = vsel %vm386, %v630, 0
        %v782 = vsel %vm636, %v777, 0
        %784 = vmatprep.subr.bf16.mxu0 0
        %785 = vmatpush1.bf16.msra.mxu0 0
        %786 = vmatprep.subr.bf16.mxu0 0
        %787 = vmatpush1.bf16.msra.mxu0 0
        %788 = vmatprep.subr.bf16.mxu0 0
        %789 = vmatpush1.bf16.msra.mxu0 0
        %790 = vmatprep.subr.bf16.mxu0 0
        %791 = vmatpush1.bf16.msra.mxu0 0
        %792 = vmatprep.subr.bf16.mxu0 0
        %793 = vmatpush1.bf16.msra.mxu0 0
        %794 = vmatprep.subr.bf16.mxu0 0
        %795 = vmatpush1.bf16.msra.mxu0 0
        %796 = vmatprep.subr.bf16.mxu0 0
        %797 = vmatpush1.bf16.msra.mxu0 0
        %798 = vmatprep.subr.bf16.mxu0 0
        %799 = vmatpush1.bf16.msra.mxu0 %v782
        %800 = vmatprep.subr.bf16.mxu0 0
        %801 = vmatpush2.bf16.msra.mxu0 0
        %802 = vmatprep.subr.bf16.mxu0 0
        %803 = vmatpush2.bf16.msra.mxu0 0
        %804 = vmatprep.subr.bf16.mxu0 0
        %805 = vmatpush2.bf16.msra.mxu0 0
        %806 = vmatprep.subr.bf16.mxu0 0
        %807 = vmatpush2.bf16.msra.mxu0 0
        %808 = vmatprep.subr.bf16.mxu0 0
        %809 = vmatpush2.bf16.msra.mxu0 0
        %810 = vmatprep.subr.bf16.mxu0 0
        %811 = vmatpush2.bf16.msra.mxu0 0
        %812 = vmatprep.subr.bf16.mxu0 0
        %813 = vmatpush2.bf16.msra.mxu0 0
        %814 = vmatprep.subr.bf16.mxu0 0
        %815 = vmatpush2.bf16.msra.mxu0 0
        %816 = vmatprep.mubr.bf16.mxu0 0
        %817 = vmatmul.mubr.bf16.gmra.mxu0 %v779
        %v818 = vpop.f32.mrf.mxu0
        %v819 = vadd.f32 0.0, %v818
        %v820 = vpop.f32.mrf.mxu0
        %v821 = vpop.f32.mrf.mxu0
        %v822 = vpop.f32.mrf.mxu0
        %823 = vdwg.mxu0
        %v824 = vrcp.pop %v617
        %v825 = vrcp.pop %v620
        %v826 = vrcp.pop %v623
        %v827 = vrcp.pop %v626
        %v828 = vmul.f32 %v675, %v824
        %v829 = vmul.f32 %v723, %v825
        %v830 = vmul.f32 %v771, %v826
        %v831 = vmul.f32 %v819, %v827
        %833 = vrot.lane.b32.xlu0 %v829, 8
        %v834 = vpop.permute.xlu0 %833
        %837 = vrot.lane.b32.xlu0 %v830, 16
        %v838 = vpop.permute.xlu0 %837
        %841 = vrot.lane.b32.xlu0 %v831, 24
        %v842 = vpop.permute.xlu0 %841
        %v844 = vsel %vm386, %v828, %v834
        %vm845 = vcmask 130048
        %v846 = vsel %vm845, %v844, %v838
        %vm847 = vcmask 195584
        %v848 = vsel %vm847, %v846, %v842
        %v849 = vpack.c.bf16 %v848, %v848
        %v850 = vld [vmem:[%s3] sm:$0xf]
        %v851 = vld [vmem:[%s3 + $0x4] sm:$0xf]
        %v852 = vld [vmem:[%s3 + $0x8] sm:$0xf]
        %v853 = vld [vmem:[%s3 + $0xc] sm:$0xf]
        %v858 = vunpack.c.l.b16 %v850
        %v859 = vunpack.c.l.b16 %v851
        %v860 = vunpack.c.l.b16 %v852
        %v861 = vunpack.c.l.b16 %v853
        %v862 = vpack.c.b16 %v859, %v858
        %v863 = vpack.c.b16 %v861, %v860
        %v867 = vsel %vm293, %v849, 0
        %869 = vmatprep.subr.bf16.mxu0 0
        %870 = vmatpush1.bf16.msra.mxu0 0
        %871 = vmatprep.subr.bf16.mxu0 0
        %872 = vmatpush1.bf16.msra.mxu0 0
        %873 = vmatprep.subr.bf16.mxu0 0
        %874 = vmatpush1.bf16.msra.mxu0 0
        %875 = vmatprep.subr.bf16.mxu0 0
        %876 = vmatpush1.bf16.msra.mxu0 0
        %877 = vmatprep.subr.bf16.mxu0 0
        %878 = vmatpush1.bf16.msra.mxu0 0
        %879 = vmatprep.subr.bf16.mxu0 0
        %880 = vmatpush1.bf16.msra.mxu0 0
        %881 = vmatprep.subr.bf16.mxu0 0
        %882 = vmatpush1.bf16.msra.mxu0 %v863
        %883 = vmatprep.subr.bf16.mxu0 0
        %884 = vmatpush1.bf16.msra.mxu0 %v862
        %885 = vmatprep.subr.bf16.mxu0 0
        %886 = vmatpush2.bf16.msra.mxu0 0
        %887 = vmatprep.subr.bf16.mxu0 0
        %888 = vmatpush2.bf16.msra.mxu0 0
        %889 = vmatprep.subr.bf16.mxu0 0
        %890 = vmatpush2.bf16.msra.mxu0 0
        %891 = vmatprep.subr.bf16.mxu0 0
        %892 = vmatpush2.bf16.msra.mxu0 0
        %893 = vmatprep.subr.bf16.mxu0 0
        %894 = vmatpush2.bf16.msra.mxu0 0
        %895 = vmatprep.subr.bf16.mxu0 0
        %896 = vmatpush2.bf16.msra.mxu0 0
        %897 = vmatprep.subr.bf16.mxu0 0
        %898 = vmatpush2.bf16.msra.mxu0 0
        %899 = vmatprep.subr.bf16.mxu0 0
        %900 = vmatpush2.bf16.msra.mxu0 0
        %901 = vmatprep.mubr.bf16.mxu0 0
        %902 = vmatmul.mubr.bf16.gmra.mxu0 %v867
        %v903 = vpop.f32.mrf.mxu0
        %v904 = vadd.f32 0.0, %v903
        %v905 = vpop.f32.mrf.mxu0
        %v906 = vpop.f32.mrf.mxu0
        %v907 = vpop.f32.mrf.mxu0
        %908 = vdwg.mxu0
        %v909 = vadd.f32 %v290, %v904
        %v910 = vld [vmem:[%s4] sm:$0x1]
        %v911 = vmul.f32 %v909, %v909
        %v912 = vsel %vm293, %v911, 0.0
        %913 = vadd.xlane.f32.xlu0 %v912
        %v914 = vpop.xlane.xlu0 %913
        %v915 = vmul.f32 %v914, %v297
        %v916 = vadd.f32 %v915, 1e-05
        %v917 = vrsqrt.pop %v916
        %v918 = vmul.f32 %v909, %v917
        %v920 = vlaneseq
        %v921 = vshrl.u32 %v920, 7
        %v922 = vsub.s32 0, %v921
        %v923 = vrot.slane %v910, %v922
        %v925 = vmul.f32 %v918, %v923
        %v926 = vpack.c.bf16 %v925, %v925
        %v927 = vld [vmem:[#allocation2] sm:$0xf]
        %v928 = vld [vmem:[#allocation2 + $0x4] sm:$0xf]
        %v929 = vld [vmem:[#allocation2 + $0x8] sm:$0xf]
        %v930 = vld [vmem:[#allocation2 + $0xc] sm:$0xf]
        %v935 = vunpack.c.l.b16 %v927
        %v936 = vunpack.c.l.b16 %v928
        %v937 = vunpack.c.l.b16 %v929
        %v938 = vunpack.c.l.b16 %v930
        %v939 = vpack.c.b16 %v936, %v935
        %v940 = vpack.c.b16 %v938, %v937
        %v944 = vsel %vm293, %v926, 0
        %946 = vmatprep.subr.bf16.mxu0 0
        %947 = vmatpush1.bf16.msra.mxu0 0
        %948 = vmatprep.subr.bf16.mxu0 0
        %949 = vmatpush1.bf16.msra.mxu0 0
        %950 = vmatprep.subr.bf16.mxu0 0
        %951 = vmatpush1.bf16.msra.mxu0 0
        %952 = vmatprep.subr.bf16.mxu0 0
        %953 = vmatpush1.bf16.msra.mxu0 0
        %954 = vmatprep.subr.bf16.mxu0 0
        %955 = vmatpush1.bf16.msra.mxu0 0
        %956 = vmatprep.subr.bf16.mxu0 0
        %957 = vmatpush1.bf16.msra.mxu0 0
        %958 = vmatprep.subr.bf16.mxu0 0
        %959 = vmatpush1.bf16.msra.mxu0 %v940
        %960 = vmatprep.subr.bf16.mxu0 0
        %961 = vmatpush1.bf16.msra.mxu0 %v939
        %962 = vmatprep.subr.bf16.mxu0 0
        %963 = vmatpush2.bf16.msra.mxu0 0
        %964 = vmatprep.subr.bf16.mxu0 0
        %965 = vmatpush2.bf16.msra.mxu0 0
        %966 = vmatprep.subr.bf16.mxu0 0
        %967 = vmatpush2.bf16.msra.mxu0 0
        %968 = vmatprep.subr.bf16.mxu0 0
        %969 = vmatpush2.bf16.msra.mxu0 0
        %970 = vmatprep.subr.bf16.mxu0 0
        %971 = vmatpush2.bf16.msra.mxu0 0
        %972 = vmatprep.subr.bf16.mxu0 0
        %973 = vmatpush2.bf16.msra.mxu0 0
        %974 = vmatprep.subr.bf16.mxu0 0
        %975 = vmatpush2.bf16.msra.mxu0 0
        %976 = vmatprep.subr.bf16.mxu0 0
        %977 = vmatpush2.bf16.msra.mxu0 0
        %978 = vmatprep.mubr.bf16.mxu0 0
        %979 = vmatmul.mubr.bf16.gmra.mxu0 %v944
        %v980 = vpop.f32.mrf.mxu0
        %v981 = vadd.f32 0.0, %v980
        %v982 = vpop.f32.mrf.mxu0
        %v983 = vpop.f32.mrf.mxu0
        %v984 = vpop.f32.mrf.mxu0
        %985 = vdwg.mxu0
        %v986 = vmul.f32 %v981, 0.5
        %v987 = vmul.f32 %v981, 0.044715
        %v988 = vmul.f32 %v987, %v981
        %v989 = vmul.f32 %v988, %v981
        %v990 = vadd.f32 %v981, %v989
        %v991 = vmul.f32 %v990, 0.7978846
        %v992 = vtanh.pop %v991
        %v993 = vadd.f32 %v992, 1.0
        %v994 = vmul.f32 %v986, %v993
        %v995 = vpack.c.bf16 %v994, %v994
        %v996 = vld [vmem:[%s6] sm:$0xf]
        %v997 = vld [vmem:[%s6 + $0x4] sm:$0xf]
        %v998 = vld [vmem:[%s6 + $0x8] sm:$0xf]
        %v999 = vld [vmem:[%s6 + $0xc] sm:$0xf]
        %v1000 = vld [vmem:[%s6 + $0x10] sm:$0xf]
        %v1001 = vld [vmem:[%s6 + $0x14] sm:$0xf]
        %v1002 = vld [vmem:[%s6 + $0x18] sm:$0xf]
        %v1003 = vld [vmem:[%s6 + $0x1c] sm:$0xf]
        %v1012 = vunpack.c.l.b16 %v996
        %v1013 = vunpack.c.l.b16 %v997
        %v1014 = vunpack.c.l.b16 %v998
        %v1015 = vunpack.c.l.b16 %v999
        %v1016 = vunpack.c.l.b16 %v1000
        %v1017 = vunpack.c.l.b16 %v1001
        %v1018 = vunpack.c.l.b16 %v1002
        %v1019 = vunpack.c.l.b16 %v1003
        %v1020 = vpack.c.b16 %v1013, %v1012
        %v1021 = vpack.c.b16 %v1015, %v1014
        %v1022 = vpack.c.b16 %v1017, %v1016
        %v1023 = vpack.c.b16 %v1019, %v1018
        %vm1028 = vcmask 523264
        %v1030 = vsel %vm1028, %v995, 0
        %1032 = vmatprep.subr.bf16.mxu0 0
        %1033 = vmatpush1.bf16.msra.mxu0 0
        %1034 = vmatprep.subr.bf16.mxu0 0
        %1035 = vmatpush1.bf16.msra.mxu0 0
        %1036 = vmatprep.subr.bf16.mxu0 0
        %1037 = vmatpush1.bf16.msra.mxu0 0
        %1038 = vmatprep.subr.bf16.mxu0 0
        %1039 = vmatpush1.bf16.msra.mxu0 0
        %1040 = vmatprep.subr.bf16.mxu0 0
        %1041 = vmatpush1.bf16.msra.mxu0 %v1023
        %1042 = vmatprep.subr.bf16.mxu0 0
        %1043 = vmatpush1.bf16.msra.mxu0 %v1022
        %1044 = vmatprep.subr.bf16.mxu0 0
        %1045 = vmatpush1.bf16.msra.mxu0 %v1021
        %1046 = vmatprep.subr.bf16.mxu0 0
        %1047 = vmatpush1.bf16.msra.mxu0 %v1020
        %1048 = vmatprep.subr.bf16.mxu0 0
        %1049 = vmatpush2.bf16.msra.mxu0 0
        %1050 = vmatprep.subr.bf16.mxu0 0
        %1051 = vmatpush2.bf16.msra.mxu0 0
        %1052 = vmatprep.subr.bf16.mxu0 0
        %1053 = vmatpush2.bf16.msra.mxu0 0
        %1054 = vmatprep.subr.bf16.mxu0 0
        %1055 = vmatpush2.bf16.msra.mxu0 0
        %1056 = vmatprep.subr.bf16.mxu0 0
        %1057 = vmatpush2.bf16.msra.mxu0 0
        %1058 = vmatprep.subr.bf16.mxu0 0
        %1059 = vmatpush2.bf16.msra.mxu0 0
        %1060 = vmatprep.subr.bf16.mxu0 0
        %1061 = vmatpush2.bf16.msra.mxu0 0
        %1062 = vmatprep.subr.bf16.mxu0 0
        %1063 = vmatpush2.bf16.msra.mxu0 0
        %1064 = vmatprep.mubr.bf16.mxu0 0
        %1065 = vmatmul.mubr.bf16.gmra.mxu0 %v1030
        %v1066 = vpop.f32.mrf.mxu0
        %v1067 = vadd.f32 0.0, %v1066
        %v1068 = vpop.f32.mrf.mxu0
        %v1069 = vpop.f32.mrf.mxu0
        %v1070 = vpop.f32.mrf.mxu0
        %1071 = vdwg.mxu0
        %v1072 = vadd.f32 %v909, %v1067
        %1073 = vst.msk [vmem:[%s284] sm:$0xff] %vm293, %v1072
        %s1074 = sand.u32 %s182, 1
        %s1075 = scalar_lea.sflag [#allocation4], %s1074
        %s1076 = sand.u32 %s182, 1
        %s1077 = smul.addr %s1076, 8
        %s1078 = scalar_lea.vmem [#allocation5], %s1077
        // Predicated region
        $region53: #{tpu_custom_call.1} parent=47 // pred_check
          %p1079 = pneg %p192
        $region54: #{tpu_custom_call.1} parent=47 // pred_check_branch
          %1081 = sbr.rel (%p1079) target = $region56
        $region55: #{tpu_custom_call.1} parent=47 // pred_region
          %s1083 = ssub.s32 128, 128
          %1084 = vsyncadd %s1075, %s1083
          %s1085 = smul.addr %s22, 128
          %s1086 = scalar_lea.hbm %s7, %s1085
          %s1088 = sshll.u32 %s1078, 4
          %s1089 = int_to_ptr.vmem [resolvable:$true] %s1088
          %1091 = dma.vmem_to_hbm [thread:$0]  %s1089, 128, %s1086, %s1075
        $region56: #{tpu_custom_call.1} parent=47 // pred_fallthru
          _
      $region48: #{tpu_custom_call.1} parent=5 // pred_fallthru
        _
      %p1092 = scmp.le.s32.totalorder 2, %s17
      // Predicated region
      $region57: #{tpu_custom_call.1} parent=5 // pred_check
        %p1093 = pneg %p1092
      $region58: #{tpu_custom_call.1} parent=5 // pred_check_branch
        %1095 = sbr.rel (%p1093) target = $region60
      $region59: #{tpu_custom_call.1} parent=5 // pred_region
        %s1096 = ssub.s32 %s17, 2
        // Predicated region
        $region61: #{tpu_custom_call.1} parent=59 // pred_check
          %p1097 = pneg %p198
        $region62: #{tpu_custom_call.1} parent=59 // pred_check_branch
          %1099 = sbr.rel (%p1097) target = $region64
        $region63: #{tpu_custom_call.1} parent=59 // pred_region
          %s1100 = sand.u32 %s183, 1
          %s1101 = scalar_lea.sflag [#allocation4], %s1100
          %s1102 = sand.u32 %s183, 1
          %s1103 = smul.addr %s1102, 8
          %s1104 = scalar_lea.vmem [#allocation5], %s1103
          %1105 = dma.done %s1101, 128
        $region64: #{tpu_custom_call.1} parent=59 // pred_fallthru
          _
      $region60: #{tpu_custom_call.1} parent=5 // pred_fallthru
        _
    $region6: #{tpu_custom_call.1} parent=1 // loop_footer
      %s21 = sadd.s32 1, %s17
    $region7: #{tpu_custom_call.1} parent=1 // loop_footer_branch
      %16 = sbr.rel target = $region3
    $region8: #{tpu_custom_call.1} parent=1 // loop_exit
      _
    %1106 = vsyncpa [#allocation3], 1
    %s1107 = scalar_lea.sflag [#allocation3], 1
    %1108 = vsyncpa %s1107, 1
    %1109 = vsyncpa [#allocation4], 1
    %s1110 = scalar_lea.sflag [#allocation4], 1
    %1111 = vsyncpa %s1110, 1

// kernel: tpu_custom_call.1
$region0: #{tpu_custom_call.1}
  #allocation0 [shape = 'u32[]', space=smem, size = 0x4, offset = 0x4, fixed_abs, tag = 'smem constant byte address 0x4 - core index']
  #allocation1 [shape = 'u32[144,128]{1,0:T(1,128)}', space=vmem, size = 0x12000, scoped, tag = 'internal scratch']
  %s0 = inlined_call_operand.vmem [shape: f32[2,8,32], index: 0, kind: input, shape index: {}]
  %s1 = inlined_call_operand.vmem [shape: f32[1,32], index: 1, kind: input, shape index: {}]
  %s2 = inlined_call_operand.vmem [shape: bf16[32,96], index: 2, kind: input, shape index: {}]
  %s3 = inlined_call_operand.vmem [shape: bf16[32,32], index: 3, kind: input, shape index: {}]
  %s4 = inlined_call_operand.vmem [shape: f32[1,32], index: 4, kind: input, shape index: {}]
  %s5 = inlined_call_operand.hbm [shape: bf16[32,64], index: 5, kind: input, shape index: {}]
  %s6 = inlined_call_operand.vmem [shape: bf16[64,32], index: 6, kind: input, shape index: {}]
  %s7 = inlined_call_operand.hbm [shape: f32[2,8,32], index: 7, kind: output, shape index: {}]
  %s8 = sld [smem:[#allocation0]]
  $region65: #{tpu_custom_call.1} parent=0
    _
  %s10 = ssub.s32 1, %s8
  %s11 = scalar_select 0, %s10, %s8
  $region1: #{tpu_custom_call.1} parent=0
    #allocation2 [shape = 'u8[8192]{0}', space=vmem, size = 0x2000, scoped, tag = 'input window, operand 5, single buffered']
    #allocation3 [shape = 's32[2]{0}', space=sflag, size = 0x8, scoped, tag = 'scoped memory for tpu_custom_call.1']
    #allocation4 [shape = 's32[2]{0}', space=sflag, size = 0x8, scoped, tag = 'scoped memory for tpu_custom_call.1']
    #allocation5 [shape = 'u8[8192]{0}', space=vmem, size = 0x2000, scoped, tag = 'output window, operand 0']
    %12 = vsyncpa [#allocation3], 0
    %13 = vsyncpa [#allocation4], 0
    %s14 = scalar_lea.sflag [#allocation4], 1
    %15 = vsyncpa %s14, 0
    loop: start=0, step=1, limit=4
    $region2: #{tpu_custom_call.1} parent=1 // loop_pre_header
      _
    $region3: #{tpu_custom_call.1} parent=1 // loop_header
      %s17 = sphi 0, %s21
      %p18 = scmp.ge.s32.totalorder %s17, 4
      %s27 = sphi 0, %s29
      %s30 = sphi 0, %s27
      %s31 = sphi 0, %s30
      %s47 = sphi 0, %s31
      %s51 = sphi 0, %s51
      %s53 = sphi 0, %s51
      %s54 = sphi 0, %s53
      %s68 = sphi 0, %s54
      %s72 = sphi 0, %s72
      %s74 = sphi 0, %s72
      %s75 = sphi 0, %s74
      %s89 = sphi 0, %s75
      %s93 = sphi 0, %s93
      %s95 = sphi 0, %s93
      %s96 = sphi 0, %s95
      %s110 = sphi 0, %s96
      %s114 = sphi 0, %s114
      %s116 = sphi 0, %s114
      %s117 = sphi 0, %s116
      %s131 = sphi 0, %s117
      %s135 = sphi 0, %s135
      %s137 = sphi 0, %s135
      %s138 = sphi 0, %s137
      %s152 = sphi 0, %s138
      %s156 = sphi 0, %s156
      %s158 = sphi 0, %s156
      %s159 = sphi 0, %s158
      %s173 = sphi 0, %s159
      %s179 = sphi 0, %s181
      %s182 = sphi 0, %s179
      %s183 = sphi 0, %s182
      %s199 = sphi 0, %s183
    $region4: #{tpu_custom_call.1} parent=1 // loop_header_branch
      %20 = sbr.rel (%p18) target = $region8
    $region5: #{tpu_custom_call.1} parent=1 // loop_body
      %s22 = ssub.s32 %s17, 1
      %s23 = ssub.s32 %s17, 2
      %s24 = sadd.s32 %s17, 1
      %s25 = ssub.s32 %s17, %s24
      %p26 = scmp.eq.s32.totalorder %s25, 0
      %s28 = sadd.s32 %s27, 1
      %s29 = scalar_select %p26, %s27, %s28
      %p32 = pneg %p26
      %p33 = scmp.eq.s32.totalorder %s17, 1
      %p34 = por %p32, %p33
      %p35 = scmp.ne.s32.totalorder %s27, %s30
      %p36 = scmp.eq.s32.totalorder %s17, 0
      %p37 = por %p35, %p36
      %p38 = scmp.ne.s32.totalorder %s27, %s30
      %p39 = scmp.eq.s32.totalorder %s22, 1
      %p40 = por %p38, %p39
      %p41 = scmp.ne.s32.totalorder %s30, %s31
      %p42 = scmp.eq.s32.totalorder %s22, 0
      %p43 = por %p41, %p42
      %p44 = scmp.ne.s32.totalorder %s30, %s31
      %p45 = scmp.eq.s32.totalorder %s23, 1
      %p46 = por %p44, %p45
      %p48 = scmp.ne.s32.totalorder %s31, %s47
      %p49 = scmp.eq.s32.totalorder %s23, 0
      %p50 = por %p48, %p49
      %s52 = sadd.s32 %s51, 1
      %p55 = scmp.eq.s32.totalorder %s17, 1
      %p56 = scmp.ne.s32.totalorder %s51, %s53
      %p57 = scmp.eq.s32.totalorder %s17, 0
      %p58 = por %p56, %p57
      %p59 = scmp.ne.s32.totalorder %s51, %s53
      %p60 = scmp.eq.s32.totalorder %s22, 1
      %p61 = por %p59, %p60
      %p62 = scmp.ne.s32.totalorder %s53, %s54
      %p63 = scmp.eq.s32.totalorder %s22, 0
      %p64 = por %p62, %p63
      %p65 = scmp.ne.s32.totalorder %s53, %s54
      %p66 = scmp.eq.s32.totalorder %s23, 1
      %p67 = por %p65, %p66
      %p69 = scmp.ne.s32.totalorder %s54, %s68
      %p70 = scmp.eq.s32.totalorder %s23, 0
      %p71 = por %p69, %p70
      %s73 = sadd.s32 %s72, 1
      %p76 = scmp.eq.s32.totalorder %s17, 1
      %p77 = scmp.ne.s32.totalorder %s72, %s74
      %p78 = scmp.eq.s32.totalorder %s17, 0
      %p79 = por %p77, %p78
      %p80 = scmp.ne.s32.totalorder %s72, %s74
      %p81 = scmp.eq.s32.totalorder %s22, 1
      %p82 = por %p80, %p81
      %p83 = scmp.ne.s32.totalorder %s74, %s75
      %p84 = scmp.eq.s32.totalorder %s22, 0
      %p85 = por %p83, %p84
      %p86 = scmp.ne.s32.totalorder %s74, %s75
      %p87 = scmp.eq.s32.totalorder %s23, 1
      %p88 = por %p86, %p87
      %p90 = scmp.ne.s32.totalorder %s75, %s89
      %p91 = scmp.eq.s32.totalorder %s23, 0
      %p92 = por %p90, %p91
      %s94 = sadd.s32 %s93, 1
      %p97 = scmp.eq.s32.totalorder %s17, 1
      %p98 = scmp.ne.s32.totalorder %s93, %s95
      %p99 = scmp.eq.s32.totalorder %s17, 0
      %p100 = por %p98, %p99
      %p101 = scmp.ne.s32.totalorder %s93, %s95
      %p102 = scmp.eq.s32.totalorder %s22, 1
      %p103 = por %p101, %p102
      %p104 = scmp.ne.s32.totalorder %s95, %s96
      %p105 = scmp.eq.s32.totalorder %s22, 0
      %p106 = por %p104, %p105
      %p107 = scmp.ne.s32.totalorder %s95, %s96
      %p108 = scmp.eq.s32.totalorder %s23, 1
      %p109 = por %p107, %p108
      %p111 = scmp.ne.s32.totalorder %s96, %s110
      %p112 = scmp.eq.s32.totalorder %s23, 0
      %p113 = por %p111, %p112
      %s115 = sadd.s32 %s114, 1
      %p118 = scmp.eq.s32.totalorder %s17, 1
      %p119 = scmp.ne.s32.totalorder %s114, %s116
      %p120 = scmp.eq.s32.totalorder %s17, 0
      %p121 = por %p119, %p120
      %p122 = scmp.ne.s32.totalorder %s114, %s116
      %p123 = scmp.eq.s32.totalorder %s22, 1
      %p124 = por %p122, %p123
      %p125 = scmp.ne.s32.totalorder %s116, %s117
      %p126 = scmp.eq.s32.totalorder %s22, 0
      %p127 = por %p125, %p126
      %p128 = scmp.ne.s32.totalorder %s116, %s117
      %p129 = scmp.eq.s32.totalorder %s23, 1
      %p130 = por %p128, %p129
      %p132 = scmp.ne.s32.totalorder %s117, %s131
      %p133 = scmp.eq.s32.totalorder %s23, 0
      %p134 = por %p132, %p133
      %s136 = sadd.s32 %s135, 1
      %p139 = scmp.eq.s32.totalorder %s17, 1
      %p140 = scmp.ne.s32.totalorder %s135, %s137
      %p141 = scmp.eq.s32.totalorder %s17, 0
      %p142 = por %p140, %p141
      %p143 = scmp.ne.s32.totalorder %s135, %s137
      %p144 = scmp.eq.s32.totalorder %s22, 1
      %p145 = por %p143, %p144
      %p146 = scmp.ne.s32.totalorder %s137, %s138
      %p147 = scmp.eq.s32.totalorder %s22, 0
      %p148 = por %p146, %p147
      %p149 = scmp.ne.s32.totalorder %s137, %s138
      %p150 = scmp.eq.s32.totalorder %s23, 1
      %p151 = por %p149, %p150
      %p153 = scmp.ne.s32.totalorder %s138, %s152
      %p154 = scmp.eq.s32.totalorder %s23, 0
      %p155 = por %p153, %p154
      %s157 = sadd.s32 %s156, 1
      %p160 = scmp.eq.s32.totalorder %s17, 1
      %p161 = scmp.ne.s32.totalorder %s156, %s158
      %p162 = scmp.eq.s32.totalorder %s17, 0
      %p163 = por %p161, %p162
      %p164 = scmp.ne.s32.totalorder %s156, %s158
      %p165 = scmp.eq.s32.totalorder %s22, 1
      %p166 = por %p164, %p165
      %p167 = scmp.ne.s32.totalorder %s158, %s159
      %p168 = scmp.eq.s32.totalorder %s22, 0
      %p169 = por %p167, %p168
      %p170 = scmp.ne.s32.totalorder %s158, %s159
      %p171 = scmp.eq.s32.totalorder %s23, 1
      %p172 = por %p170, %p171
      %p174 = scmp.ne.s32.totalorder %s159, %s173
      %p175 = scmp.eq.s32.totalorder %s23, 0
      %p176 = por %p174, %p175
      %s177 = ssub.s32 %s17, %s24
      %p178 = scmp.eq.s32.totalorder %s177, 0
      %s180 = sadd.s32 %s179, 1
      %s181 = scalar_select %p178, %s179, %s180
      %p184 = pneg %p178
      %p185 = scmp.eq.s32.totalorder %s17, 1
      %p186 = por %p184, %p185
      %p187 = scmp.ne.s32.totalorder %s179, %s182
      %p188 = scmp.eq.s32.totalorder %s17, 0
      %p189 = por %p187, %p188
      %p190 = scmp.ne.s32.totalorder %s179, %s182
      %p191 = scmp.eq.s32.totalorder %s22, 1
      %p192 = por %p190, %p191
      %p193 = scmp.ne.s32.totalorder %s182, %s183
      %p194 = scmp.eq.s32.totalorder %s22, 0
      %p195 = por %p193, %p194
      %p196 = scmp.ne.s32.totalorder %s182, %s183
      %p197 = scmp.eq.s32.totalorder %s23, 1
      %p198 = por %p196, %p197
      %p200 = scmp.ne.s32.totalorder %s183, %s199
      %p201 = scmp.eq.s32.totalorder %s23, 0
      %p202 = por %p200, %p201
      %p203 = scmp.le.s32.totalorder 1, %s17
      %p204 = scmp.lt.s32.totalorder %s17, 3
      %p205 = pnand %p203, %p204
      %p206 = pneg %p205
      // Predicated region
      $region9: #{tpu_custom_call.1} parent=5 // pred_check
        _
      $region10: #{tpu_custom_call.1} parent=5 // pred_check_branch
        %208 = sbr.rel (%p205) target = $region12
      $region11: #{tpu_custom_call.1} parent=5 // pred_region
        %s209 = ssub.s32 %s17, 1
        // Predicated region
        $region13: #{tpu_custom_call.1} parent=11 // pred_check
          %p210 = pneg %p64
        $region14: #{tpu_custom_call.1} parent=11 // pred_check_branch
          %212 = sbr.rel (%p210) target = $region16
        $region15: #{tpu_custom_call.1} parent=11 // pred_region
          _
        $region16: #{tpu_custom_call.1} parent=11 // pred_fallthru
          _
        // Predicated region
        $region17: #{tpu_custom_call.1} parent=11 // pred_check
          %p213 = pneg %p85
        $region18: #{tpu_custom_call.1} parent=11 // pred_check_branch
          %215 = sbr.rel (%p213) target = $region20
        $region19: #{tpu_custom_call.1} parent=11 // pred_region
          _
        $region20: #{tpu_custom_call.1} parent=11 // pred_fallthru
          _
        // Predicated region
        $region21: #{tpu_custom_call.1} parent=11 // pred_check
          %p216 = pneg %p106
        $region22: #{tpu_custom_call.1} parent=11 // pred_check_branch
          %218 = sbr.rel (%p216) target = $region24
        $region23: #{tpu_custom_call.1} parent=11 // pred_region
          _
        $region24: #{tpu_custom_call.1} parent=11 // pred_fallthru
          _
        // Predicated region
        $region25: #{tpu_custom_call.1} parent=11 // pred_check
          %p219 = pneg %p127
        $region26: #{tpu_custom_call.1} parent=11 // pred_check_branch
          %221 = sbr.rel (%p219) target = $region28
        $region27: #{tpu_custom_call.1} parent=11 // pred_region
          _
        $region28: #{tpu_custom_call.1} parent=11 // pred_fallthru
          _
        // Predicated region
        $region29: #{tpu_custom_call.1} parent=11 // pred_check
          %p222 = pneg %p148
        $region30: #{tpu_custom_call.1} parent=11 // pred_check_branch
          %224 = sbr.rel (%p222) target = $region32
        $region31: #{tpu_custom_call.1} parent=11 // pred_region
          %s226 = ssub.s32 256, 256
          %227 = vsyncadd [#allocation3], %s226
          %s228 = sshll.u32 [#allocation2], 4
          %s229 = int_to_ptr.vmem [resolvable:$true] %s228
          %234 = dma.hbm_to_vmem [thread:$0]  %s5, 256, %s229, [#allocation3], 64, 64, 4
        $region32: #{tpu_custom_call.1} parent=11 // pred_fallthru
          _
        // Predicated region
        $region33: #{tpu_custom_call.1} parent=11 // pred_check
          %p235 = pneg %p169
        $region34: #{tpu_custom_call.1} parent=11 // pred_check_branch
          %237 = sbr.rel (%p235) target = $region36
        $region35: #{tpu_custom_call.1} parent=11 // pred_region
          _
        $region36: #{tpu_custom_call.1} parent=11 // pred_fallthru
          _
      $region12: #{tpu_custom_call.1} parent=5 // pred_fallthru
        _
      %p238 = scmp.lt.s32.totalorder %s17, 2
      // Predicated region
      $region37: #{tpu_custom_call.1} parent=5 // pred_check
        %p239 = pneg %p238
      $region38: #{tpu_custom_call.1} parent=5 // pred_check_branch
        %241 = sbr.rel (%p239) target = $region40
      $region39: #{tpu_custom_call.1} parent=5 // pred_region
        // Predicated region
        $region41: #{tpu_custom_call.1} parent=39 // pred_check
          %p242 = pneg %p37
        $region42: #{tpu_custom_call.1} parent=39 // pred_check_branch
          %244 = sbr.rel (%p242) target = $region44
        $region43: #{tpu_custom_call.1} parent=39 // pred_region
          %p245 = scmp.lt.s32.totalorder %s17, 1
          %s246 = scalar_select %p245, %s17, 1
          %s247 = smul.addr %s246, 8
          %s248 = scalar_lea.vmem %s0, %s247
        $region44: #{tpu_custom_call.1} parent=39 // pred_fallthru
          _
      $region40: #{tpu_custom_call.1} parent=5 // pred_fallthru
        _
      %p249 = scmp.le.s32.totalorder 1, %s17
      %p250 = scmp.lt.s32.totalorder %s17, 3
      %p251 = pnand %p249, %p250
      %p252 = pneg %p251
      // Predicated region
      $region45: #{tpu_custom_call.1} parent=5 // pred_check
        _
      $region46: #{tpu_custom_call.1} parent=5 // pred_check_branch
        %254 = sbr.rel (%p251) target = $region48
      $region47: #{tpu_custom_call.1} parent=5 // pred_region
        %s255 = ssub.s32 %s17, 1
        // Predicated region
        $region49: #{tpu_custom_call.1} parent=47 // pred_check
          %p256 = pneg %p148
        $region50: #{tpu_custom_call.1} parent=47 // pred_check_branch
          %258 = sbr.rel (%p256) target = $region52
        $region51: #{tpu_custom_call.1} parent=47 // pred_region
          %259 = dma.done [#allocation3], 256
        $region52: #{tpu_custom_call.1} parent=47 // pred_fallthru
          _
        %p260 = scmp.lt.s32.totalorder %s22, 1
        %s261 = scalar_select %p260, %s22, 1
        %s262 = smul.addr %s261, 8
        %s263 = scalar_lea.vmem %s0, %s262
        %p264 = pneg %p43
        %p265 = pneg %p40
        %p266 = pneg %p64
        %p267 = pneg %p61
        %p268 = pneg %p85
        %p269 = pneg %p82
        %p270 = pneg %p106
        %p271 = pneg %p103
        %p272 = pneg %p127
        %p273 = pneg %p124
        %p274 = pneg %p148
        %p275 = pneg %p145
        %p276 = pneg %p169
        %p277 = pneg %p166
        %p278 = pneg %p195
        %p279 = pneg %p192
        %s280 = sand.u32 %s182, 1
        %s281 = scalar_lea.sflag [#allocation4], %s280
        %s282 = sand.u32 %s182, 1
        %s283 = smul.addr %s282, 8
        %s284 = scalar_lea.vmem [#allocation5], %s283
        %p285 = scmp.lt.s32.totalorder %s22, 1
        %s286 = scalar_select %p285, %s22, 1
        %s287 = smul.addr %s286, 8
        %s288 = scalar_lea.vmem %s0, %s287
        %v290 = vld [vmem:[%s288] sm:$0xff]
        %v291 = vld [vmem:[%s1] sm:$0x1]
        %v292 = vmul.f32 %v290, %v290
        %vm293 = vcmask 261120
        %v294 = vsel %vm293, %v292, 0.0
        %295 = vadd.xlane.f32.xlu0 %v294
        %v296 = vpop.xlane.xlu0 %295
        %v297 = vrcp.pop 32.0
        %v298 = vmul.f32 %v296, %v297
        %v299 = vadd.f32 %v298, 1e-05
        %v300 = vrsqrt.pop %v299
        %v301 = vmul.f32 %v290, %v300
        %v303 = vlaneseq
        %v304 = vshrl.u32 %v303, 7
        %v305 = vsub.s32 0, %v304
        %v306 = vrot.slane %v291, %v305
        %v308 = vmul.f32 %v301, %v306
        %v309 = vpack.c.bf16 %v308, %v308
        %v310 = vld [vmem:[%s2] sm:$0xf]
        %v311 = vld [vmem:[%s2 + $0x4] sm:$0xf]
        %v312 = vld [vmem:[%s2 + $0x8] sm:$0xf]
        %v313 = vld [vmem:[%s2 + $0xc] sm:$0xf]
        %v318 = vunpack.c.l.b16 %v310
        %v319 = vunpack.c.l.b16 %v311
        %v320 = vunpack.c.l.b16 %v312
        %v321 = vunpack.c.l.b16 %v313
        %v322 = vpack.c.b16 %v319, %v318
        %v323 = vpack.c.b16 %v321, %v320
        %v327 = vsel %vm293, %v309, 0
        %329 = vmatprep.subr.bf16.mxu0 0
        %330 = vmatpush1.bf16.msra.mxu0 0
        %331 = vmatprep.subr.bf16.mxu0 0
        %332 = vmatpush1.bf16.msra.mxu0 0
        %333 = vmatprep.subr.bf16.mxu0 0
        %334 = vmatpush1.bf16.msra.mxu0 0
        %335 = vmatprep.subr.bf16.mxu0 0
        %336 = vmatpush1.bf16.msra.mxu0 0
        %337 = vmatprep.subr.bf16.mxu0 0
        %338 = vmatpush1.bf16.msra.mxu0 0
        %339 = vmatprep.subr.bf16.mxu0 0
        %340 = vmatpush1.bf16.msra.mxu0 0
        %341 = vmatprep.subr.bf16.mxu0 0
        %342 = vmatpush1.bf16.msra.mxu0 %v323
        %343 = vmatprep.subr.bf16.mxu0 0
        %344 = vmatpush1.bf16.msra.mxu0 %v322
        %345 = vmatprep.subr.bf16.mxu0 0
        %346 = vmatpush2.bf16.msra.mxu0 0
        %347 = vmatprep.subr.bf16.mxu0 0
        %348 = vmatpush2.bf16.msra.mxu0 0
        %349 = vmatprep.subr.bf16.mxu0 0
        %350 = vmatpush2.bf16.msra.mxu0 0
        %351 = vmatprep.subr.bf16.mxu0 0
        %352 = vmatpush2.bf16.msra.mxu0 0
        %353 = vmatprep.subr.bf16.mxu0 0
        %354 = vmatpush2.bf16.msra.mxu0 0
        %355 = vmatprep.subr.bf16.mxu0 0
        %356 = vmatpush2.bf16.msra.mxu0 0
        %357 = vmatprep.subr.bf16.mxu0 0
        %358 = vmatpush2.bf16.msra.mxu0 0
        %359 = vmatprep.subr.bf16.mxu0 0
        %360 = vmatpush2.bf16.msra.mxu0 0
        %361 = vmatprep.mubr.bf16.mxu0 0
        %362 = vmatmul.mubr.bf16.gmra.mxu0 %v327
        %v363 = vpop.f32.mrf.mxu0
        %v364 = vadd.f32 0.0, %v363
        %v365 = vpop.f32.mrf.mxu0
        %v366 = vpop.f32.mrf.mxu0
        %v367 = vpop.f32.mrf.mxu0
        %368 = vdwg.mxu0
        %370 = vrot.lane.b32.xlu0 %v364, 120
        %v371 = vpop.permute.xlu0 %370
        %373 = vrot.lane.b32.xlu0 %v364, 112
        %v374 = vpop.permute.xlu0 %373
        %376 = vrot.lane.b32.xlu0 %v364, 104
        %v377 = vpop.permute.xlu0 %376
        %v379 = vpack.c.bf16 %v364, %v364
        %v380 = vpack.c.bf16 %v371, %v371
        %v381 = vpack.c.bf16 %v374, %v374
        %v382 = vpack.c.bf16 %v377, %v377
        %384 = vrot.lane.b32.xlu0 %v379, 96
        %v385 = vpop.permute.xlu0 %384
        %vm386 = vcmask 64512
        %v388 = vsel %vm386, %v379, 0
        %v391 = vsel %vm386, %v385, 0
        %393 = vmatprep.subr.bf16.mxu0 0
        %394 = vmatpush1.bf16.xpose.msra.mxu0 0
        %395 = vmatprep.subr.bf16.mxu0 0
        %396 = vmatpush1.bf16.xpose.msra.mxu0 0
        %397 = vmatprep.subr.bf16.mxu0 0
        %398 = vmatpush1.bf16.xpose.msra.mxu0 0
        %399 = vmatprep.subr.bf16.mxu0 0
        %400 = vmatpush1.bf16.xpose.msra.mxu0 0
        %401 = vmatprep.subr.bf16.mxu0 0
        %402 = vmatpush1.bf16.xpose.msra.mxu0 0
        %403 = vmatprep.subr.bf16.mxu0 0
        %404 = vmatpush1.bf16.xpose.msra.mxu0 0
        %405 = vmatprep.subr.bf16.mxu0 0
        %406 = vmatpush1.bf16.xpose.msra.mxu0 0
        %407 = vmatprep.subr.bf16.mxu0 0
        %408 = vmatpush1.bf16.xpose.msra.mxu0 %v391
        %409 = vmatprep.subr.bf16.mxu0 0
        %410 = vmatpush2.bf16.xpose.msra.mxu0 0
        %411 = vmatprep.subr.bf16.mxu0 0
        %412 = vmatpush2.bf16.xpose.msra.mxu0 0
        %413 = vmatprep.subr.bf16.mxu0 0
        %414 = vmatpush2.bf16.xpose.msra.mxu0 0
        %415 = vmatprep.subr.bf16.mxu0 0
        %416 = vmatpush2.bf16.xpose.msra.mxu0 0
        %417 = vmatprep.subr.bf16.mxu0 0
        %418 = vmatpush2.bf16.xpose.msra.mxu0 0
        %419 = vmatprep.subr.bf16.mxu0 0
        %420 = vmatpush2.bf16.xpose.msra.mxu0 0
        %421 = vmatprep.subr.bf16.mxu0 0
        %422 = vmatpush2.bf16.xpose.msra.mxu0 0
        %423 = vmatprep.subr.bf16.mxu0 0
        %424 = vmatpush2.bf16.xpose.msra.mxu0 0
        %425 = vmatprep.mubr.bf16.mxu0 0
        %426 = vmatmul.mubr.bf16.gmra.mxu0 %v388
        %v427 = vpop.f32.mrf.mxu0
        %v428 = vadd.f32 0.0, %v427
        %v429 = vpop.f32.mrf.mxu0
        %v430 = vpop.f32.mrf.mxu0
        %v431 = vpop.f32.mrf.mxu0
        %432 = vdwg.mxu0
        %434 = vrot.lane.b32.xlu0 %v380, 96
        %v435 = vpop.permute.xlu0 %434
        %v437 = vsel %vm386, %v380, 0
        %v440 = vsel %vm386, %v435, 0
        %442 = vmatprep.subr.bf16.mxu0 0
        %443 = vmatpush1.bf16.xpose.msra.mxu0 0
        %444 = vmatprep.subr.bf16.mxu0 0
        %445 = vmatpush1.bf16.xpose.msra.mxu0 0
        %446 = vmatprep.subr.bf16.mxu0 0
        %447 = vmatpush1.bf16.xpose.msra.mxu0 0
        %448 = vmatprep.subr.bf16.mxu0 0
        %449 = vmatpush1.bf16.xpose.msra.mxu0 0
        %450 = vmatprep.subr.bf16.mxu0 0
        %451 = vmatpush1.bf16.xpose.msra.mxu0 0
        %452 = vmatprep.subr.bf16.mxu0 0
        %453 = vmatpush1.bf16.xpose.msra.mxu0 0
        %454 = vmatprep.subr.bf16.mxu0 0
        %455 = vmatpush1.bf16.xpose.msra.mxu0 0
        %456 = vmatprep.subr.bf16.mxu0 0
        %457 = vmatpush1.bf16.xpose.msra.mxu0 %v440
        %458 = vmatprep.subr.bf16.mxu0 0
        %459 = vmatpush2.bf16.xpose.msra.mxu0 0
        %460 = vmatprep.subr.bf16.mxu0 0
        %461 = vmatpush2.bf16.xpose.msra.mxu0 0
        %462 = vmatprep.subr.bf16.mxu0 0
        %463 = vmatpush2.bf16.xpose.msra.mxu0 0
        %464 = vmatprep.subr.bf16.mxu0 0
        %465 = vmatpush2.bf16.xpose.msra.mxu0 0
        %466 = vmatprep.subr.bf16.mxu0 0
        %467 = vmatpush2.bf16.xpose.msra.mxu0 0
        %468 = vmatprep.subr.bf16.mxu0 0
        %469 = vmatpush2.bf16.xpose.msra.mxu0 0
        %470 = vmatprep.subr.bf16.mxu0 0
        %471 = vmatpush2.bf16.xpose.msra.mxu0 0
        %472 = vmatprep.subr.bf16.mxu0 0
        %473 = vmatpush2.bf16.xpose.msra.mxu0 0
        %474 = vmatprep.mubr.bf16.mxu0 0
        %475 = vmatmul.mubr.bf16.gmra.mxu0 %v437
        %v476 = vpop.f32.mrf.mxu0
        %v477 = vadd.f32 0.0, %v476
        %v478 = vpop.f32.mrf.mxu0
        %v479 = vpop.f32.mrf.mxu0
        %v480 = vpop.f32.mrf.mxu0
        %481 = vdwg.mxu0
        %483 = vrot.lane.b32.xlu0 %v381, 96
        %v484 = vpop.permute.xlu0 %483
        %v486 = vsel %vm386, %v381, 0
        %v489 = vsel %vm386, %v484, 0
        %491 = vmatprep.subr.bf16.mxu0 0
        %492 = vmatpush1.bf16.xpose.msra.mxu0 0
        %493 = vmatprep.subr.bf16.mxu0 0
        %494 = vmatpush1.bf16.xpose.msra.mxu0 0
        %495 = vmatprep.subr.bf16.mxu0 0
        %496 = vmatpush1.bf16.xpose.msra.mxu0 0
        %497 = vmatprep.subr.bf16.mxu0 0
        %498 = vmatpush1.bf16.xpose.msra.mxu0 0
        %499 = vmatprep.subr.bf16.mxu0 0
        %500 = vmatpush1.bf16.xpose.msra.mxu0 0
        %501 = vmatprep.subr.bf16.mxu0 0
        %502 = vmatpush1.bf16.xpose.msra.mxu0 0
        %503 = vmatprep.subr.bf16.mxu0 0
        %504 = vmatpush1.bf16.xpose.msra.mxu0 0
        %505 = vmatprep.subr.bf16.mxu0 0
        %506 = vmatpush1.bf16.xpose.msra.mxu0 %v489
        %507 = vmatprep.subr.bf16.mxu0 0
        %508 = vmatpush2.bf16.xpose.msra.mxu0 0
        %509 = vmatprep.subr.bf16.mxu0 0
        %510 = vmatpush2.bf16.xpose.msra.mxu0 0
        %511 = vmatprep.subr.bf16.mxu0 0
        %512 = vmatpush2.bf16.xpose.msra.mxu0 0
        %513 = vmatprep.subr.bf16.mxu0 0
        %514 = vmatpush2.bf16.xpose.msra.mxu0 0
        %515 = vmatprep.subr.bf16.mxu0 0
        %516 = vmatpush2.bf16.xpose.msra.mxu0 0
        %517 = vmatprep.subr.bf16.mxu0 0
        %518 = vmatpush2.bf16.xpose.msra.mxu0 0
        %519 = vmatprep.subr.bf16.mxu0 0
        %520 = vmatpush2.bf16.xpose.msra.mxu0 0
        %521 = vmatprep.subr.bf16.mxu0 0
        %522 = vmatpush2.bf16.xpose.msra.mxu0 0
        %523 = vmatprep.mubr.bf16.mxu0 0
        %524 = vmatmul.mubr.bf16.gmra.mxu0 %v486
        %v525 = vpop.f32.mrf.mxu0
        %v526 = vadd.f32 0.0, %v525
        %v527 = vpop.f32.mrf.mxu0
        %v528 = vpop.f32.mrf.mxu0
        %v529 = vpop.f32.mrf.mxu0
        %530 = vdwg.mxu0
        %532 = vrot.lane.b32.xlu0 %v382, 96
        %v533 = vpop.permute.xlu0 %532
        %v535 = vsel %vm386, %v382, 0
        %v538 = vsel %vm386, %v533, 0
        %540 = vmatprep.subr.bf16.mxu0 0
        %541 = vmatpush1.bf16.xpose.msra.mxu0 0
        %542 = vmatprep.subr.bf16.mxu0 0
        %543 = vmatpush1.bf16.xpose.msra.mxu0 0
        %544 = vmatprep.subr.bf16.mxu0 0
        %545 = vmatpush1.bf16.xpose.msra.mxu0 0
        %546 = vmatprep.subr.bf16.mxu0 0
        %547 = vmatpush1.bf16.xpose.msra.mxu0 0
        %548 = vmatprep.subr.bf16.mxu0 0
        %549 = vmatpush1.bf16.xpose.msra.mxu0 0
        %550 = vmatprep.subr.bf16.mxu0 0
        %551 = vmatpush1.bf16.xpose.msra.mxu0 0
        %552 = vmatprep.subr.bf16.mxu0 0
        %553 = vmatpush1.bf16.xpose.msra.mxu0 0
        %554 = vmatprep.subr.bf16.mxu0 0
        %555 = vmatpush1.bf16.xpose.msra.mxu0 %v538
        %556 = vmatprep.subr.bf16.mxu0 0
        %557 = vmatpush2.bf16.xpose.msra.mxu0 0
        %558 = vmatprep.subr.bf16.mxu0 0
        %559 = vmatpush2.bf16.xpose.msra.mxu0 0
        %560 = vmatprep.subr.bf16.mxu0 0
        %561 = vmatpush2.bf16.xpose.msra.mxu0 0
        %562 = vmatprep.subr.bf16.mxu0 0
        %563 = vmatpush2.bf16.xpose.msra.mxu0 0
        %564 = vmatprep.subr.bf16.mxu0 0
        %565 = vmatpush2.bf16.xpose.msra.mxu0 0
        %566 = vmatprep.subr.bf16.mxu0 0
        %567 = vmatpush2.bf16.xpose.msra.mxu0 0
        %568 = vmatprep.subr.bf16.mxu0 0
        %569 = vmatpush2.bf16.xpose.msra.mxu0 0
        %570 = vmatprep.subr.bf16.mxu0 0
        %571 = vmatpush2.bf16.xpose.msra.mxu0 0
        %572 = vmatprep.mubr.bf16.mxu0 0
        %573 = vmatmul.mubr.bf16.gmra.mxu0 %v535
        %v574 = vpop.f32.mrf.mxu0
        %v575 = vadd.f32 0.0, %v574
        %v576 = vpop.f32.mrf.mxu0
        %v577 = vpop.f32.mrf.mxu0
        %v578 = vpop.f32.mrf.mxu0
        %579 = vdwg.mxu0
        %v580 = vlaneseq
        %v581 = vshrl.u32 %v580, 7
        %v582 = vlaneseq
        %v583 = vand.u32 %v582, 127
        %vm584 = vcmp.le.s32.totalorder %v583, %v581
        %v585 = vsel %vm584, 1, 0
        %vm586 = vcmp.eq.s32.totalorder %v585, 1
        %v587 = vsel %vm586, %v428, -1e+30
        %v588 = vsel %vm586, %v477, -1e+30
        %v589 = vsel %vm586, %v526, -1e+30
        %v590 = vsel %vm586, %v575, -1e+30
        %v591 = vsel %vm386, %v587, -inf
        %592 = vmax.xlane.f32.xlu0 %v591
        %v593 = vpop.xlane.xlu0 %592
        %v594 = vsel %vm386, %v588, -inf
        %595 = vmax.xlane.f32.xlu0 %v594
        %v596 = vpop.xlane.xlu0 %595
        %v597 = vsel %vm386, %v589, -inf
        %598 = vmax.xlane.f32.xlu0 %v597
        %v599 = vpop.xlane.xlu0 %598
        %v600 = vsel %vm386, %v590, -inf
        %601 = vmax.xlane.f32.xlu0 %v600
        %v602 = vpop.xlane.xlu0 %601
        %v603 = vsub.f32 %v587, %v593
        %v604 = vsub.f32 %v588, %v596
        %v605 = vsub.f32 %v589, %v599
        %v606 = vsub.f32 %v590, %v602
        %v607 = vmul.f32 %v603, 1.442695
        %v608 = vpow.pop %v607
        %v609 = vmul.f32 %v604, 1.442695
        %v610 = vpow.pop %v609
        %v611 = vmul.f32 %v605, 1.442695
        %v612 = vpow.pop %v611
        %v613 = vmul.f32 %v606, 1.442695
        %v614 = vpow.pop %v613
        %v615 = vsel %vm386, %v608, 0.0
        %616 = vadd.xlane.f32.xlu0 %v615
        %v617 = vpop.xlane.xlu0 %616
        %v618 = vsel %vm386, %v610, 0.0
        %619 = vadd.xlane.f32.xlu0 %v618
        %v620 = vpop.xlane.xlu0 %619
        %v621 = vsel %vm386, %v612, 0.0
        %622 = vadd.xlane.f32.xlu0 %v621
        %v623 = vpop.xlane.xlu0 %622
        %v624 = vsel %vm386, %v614, 0.0
        %625 = vadd.xlane.f32.xlu0 %v624
        %v626 = vpop.xlane.xlu0 %625
        %v627 = vpack.c.bf16 %v608, %v608
        %v628 = vpack.c.bf16 %v610, %v610
        %v629 = vpack.c.bf16 %v612, %v612
        %v630 = vpack.c.bf16 %v614, %v614
        %631 = vrot.lane.b32.xlu0 %v379, 64
        %v632 = vpop.permute.xlu0 %631
        %v634 = vsel %vm386, %v627, 0
        %vm636 = vcmask 1043456
        %v638 = vsel %vm636, %v632, 0
        %640 = vmatprep.subr.bf16.mxu0 0
        %641 = vmatpush1.bf16.msra.mxu0 0
        %642 = vmatprep.subr.bf16.mxu0 0
        %643 = vmatpush1.bf16.msra.mxu0 0
        %644 = vmatprep.subr.bf16.mxu0 0
        %645 = vmatpush1.bf16.msra.mxu0 0
        %646 = vmatprep.subr.bf16.mxu0 0
        %647 = vmatpush1.bf16.msra.mxu0 0
        %648 = vmatprep.subr.bf16.mxu0 0
        %649 = vmatpush1.bf16.msra.mxu0 0
        %650 = vmatprep.subr.bf16.mxu0 0
        %651 = vmatpush1.bf16.msra.mxu0 0
        %652 = vmatprep.subr.bf16.mxu0 0
        %653 = vmatpush1.bf16.msra.mxu0 0
        %654 = vmatprep.subr.bf16.mxu0 0
        %655 = vmatpush1.bf16.msra.mxu0 %v638
        %656 = vmatprep.subr.bf16.mxu0 0
        %657 = vmatpush2.bf16.msra.mxu0 0
        %658 = vmatprep.subr.bf16.mxu0 0
        %659 = vmatpush2.bf16.msra.mxu0 0
        %660 = vmatprep.subr.bf16.mxu0 0
        %661 = vmatpush2.bf16.msra.mxu0 0
        %662 = vmatprep.subr.bf16.mxu0 0
        %663 = vmatpush2.bf16.msra.mxu0 0
        %664 = vmatprep.subr.bf16.mxu0 0
        %665 = vmatpush2.bf16.msra.mxu0 0
        %666 = vmatprep.subr.bf16.mxu0 0
        %667 = vmatpush2.bf16.msra.mxu0 0
        %668 = vmatprep.subr.bf16.mxu0 0
        %669 = vmatpush2.bf16.msra.mxu0 0
        %670 = vmatprep.subr.bf16.mxu0 0
        %671 = vmatpush2.bf16.msra.mxu0 0
        %672 = vmatprep.mubr.bf16.mxu0 0
        %673 = vmatmul.mubr.bf16.gmra.mxu0 %v634
        %v674 = vpop.f32.mrf.mxu0
        %v675 = vadd.f32 0.0, %v674
        %v676 = vpop.f32.mrf.mxu0
        %v677 = vpop.f32.mrf.mxu0
        %v678 = vpop.f32.mrf.mxu0
        %679 = vdwg.mxu0
        %680 = vrot.lane.b32.xlu0 %v380, 64
        %v681 = vpop.permute.xlu0 %680
        %v683 = vsel %vm386, %v628, 0
        %v686 = vsel %vm636, %v681, 0
        %688 = vmatprep.subr.bf16.mxu0 0
        %689 = vmatpush1.bf16.msra.mxu0 0
        %690 = vmatprep.subr.bf16.mxu0 0
        %691 = vmatpush1.bf16.msra.mxu0 0
        %692 = vmatprep.subr.bf16.mxu0 0
        %693 = vmatpush1.bf16.msra.mxu0 0
        %694 = vmatprep.subr.bf16.mxu0 0
        %695 = vmatpush1.bf16.msra.mxu0 0
        %696 = vmatprep.subr.bf16.mxu0 0
        %697 = vmatpush1.bf16.msra.mxu0 0
        %698 = vmatprep.subr.bf16.mxu0 0
        %699 = vmatpush1.bf16.msra.mxu0 0
        %700 = vmatprep.subr.bf16.mxu0 0
        %701 = vmatpush1.bf16.msra.mxu0 0
        %702 = vmatprep.subr.bf16.mxu0 0
        %703 = vmatpush1.bf16.msra.mxu0 %v686
        %704 = vmatprep.subr.bf16.mxu0 0
        %705 = vmatpush2.bf16.msra.mxu0 0
        %706 = vmatprep.subr.bf16.mxu0 0
        %707 = vmatpush2.bf16.msra.mxu0 0
        %708 = vmatprep.subr.bf16.mxu0 0
        %709 = vmatpush2.bf16.msra.mxu0 0
        %710 = vmatprep.subr.bf16.mxu0 0
        %711 = vmatpush2.bf16.msra.mxu0 0
        %712 = vmatprep.subr.bf16.mxu0 0
        %713 = vmatpush2.bf16.msra.mxu0 0
        %714 = vmatprep.subr.bf16.mxu0 0
        %715 = vmatpush2.bf16.msra.mxu0 0
        %716 = vmatprep.subr.bf16.mxu0 0
        %717 = vmatpush2.bf16.msra.mxu0 0
        %718 = vmatprep.subr.bf16.mxu0 0
        %719 = vmatpush2.bf16.msra.mxu0 0
        %720 = vmatprep.mubr.bf16.mxu0 0
        %721 = vmatmul.mubr.bf16.gmra.mxu0 %v683
        %v722 = vpop.f32.mrf.mxu0
        %v723 = vadd.f32 0.0, %v722
        %v724 = vpop.f32.mrf.mxu0
        %v725 = vpop.f32.mrf.mxu0
        %v726 = vpop.f32.mrf.mxu0
        %727 = vdwg.mxu0
        %728 = vrot.lane.b32.xlu0 %v381, 64
        %v729 = vpop.permute.xlu0 %728
        %v731 = vsel %vm386, %v629, 0
        %v734 = vsel %vm636, %v729, 0
        %736 = vmatprep.subr.bf16.mxu0 0
        %737 = vmatpush1.bf16.msra.mxu0 0
        %738 = vmatprep.subr.bf16.mxu0 0
        %739 = vmatpush1.bf16.msra.mxu0 0
        %740 = vmatprep.subr.bf16.mxu0 0
        %741 = vmatpush1.bf16.msra.mxu0 0
        %742 = vmatprep.subr.bf16.mxu0 0
        %743 = vmatpush1.bf16.msra.mxu0 0
        %744 = vmatprep.subr.bf16.mxu0 0
        %745 = vmatpush1.bf16.msra.mxu0 0
        %746 = vmatprep.subr.bf16.mxu0 0
        %747 = vmatpush1.bf16.msra.mxu0 0
        %748 = vmatprep.subr.bf16.mxu0 0
        %749 = vmatpush1.bf16.msra.mxu0 0
        %750 = vmatprep.subr.bf16.mxu0 0
        %751 = vmatpush1.bf16.msra.mxu0 %v734
        %752 = vmatprep.subr.bf16.mxu0 0
        %753 = vmatpush2.bf16.msra.mxu0 0
        %754 = vmatprep.subr.bf16.mxu0 0
        %755 = vmatpush2.bf16.msra.mxu0 0
        %756 = vmatprep.subr.bf16.mxu0 0
        %757 = vmatpush2.bf16.msra.mxu0 0
        %758 = vmatprep.subr.bf16.mxu0 0
        %759 = vmatpush2.bf16.msra.mxu0 0
        %760 = vmatprep.subr.bf16.mxu0 0
        %761 = vmatpush2.bf16.msra.mxu0 0
        %762 = vmatprep.subr.bf16.mxu0 0
        %763 = vmatpush2.bf16.msra.mxu0 0
        %764 = vmatprep.subr.bf16.mxu0 0
        %765 = vmatpush2.bf16.msra.mxu0 0
        %766 = vmatprep.subr.bf16.mxu0 0
        %767 = vmatpush2.bf16.msra.mxu0 0
        %768 = vmatprep.mubr.bf16.mxu0 0
        %769 = vmatmul.mubr.bf16.gmra.mxu0 %v731
        %v770 = vpop.f32.mrf.mxu0
        %v771 = vadd.f32 0.0, %v770
        %v772 = vpop.f32.mrf.mxu0
        %v773 = vpop.f32.mrf.mxu0
        %v774 = vpop.f32.mrf.mxu0
        %775 = vdwg.mxu0
        %776 = vrot.lane.b32.xlu0 %v382, 64
        %v777 = vpop.permute.xlu0 %776
        %v779 = vsel %vm386, %v630, 0
        %v782 = vsel %vm636, %v777, 0
        %784 = vmatprep.subr.bf16.mxu0 0
        %785 = vmatpush1.bf16.msra.mxu0 0
        %786 = vmatprep.subr.bf16.mxu0 0
        %787 = vmatpush1.bf16.msra.mxu0 0
        %788 = vmatprep.subr.bf16.mxu0 0
        %789 = vmatpush1.bf16.msra.mxu0 0
        %790 = vmatprep.subr.bf16.mxu0 0
        %791 = vmatpush1.bf16.msra.mxu0 0
        %792 = vmatprep.subr.bf16.mxu0 0
        %793 = vmatpush1.bf16.msra.mxu0 0
        %794 = vmatprep.subr.bf16.mxu0 0
        %795 = vmatpush1.bf16.msra.mxu0 0
        %796 = vmatprep.subr.bf16.mxu0 0
        %797 = vmatpush1.bf16.msra.mxu0 0
        %798 = vmatprep.subr.bf16.mxu0 0
        %799 = vmatpush1.bf16.msra.mxu0 %v782
        %800 = vmatprep.subr.bf16.mxu0 0
        %801 = vmatpush2.bf16.msra.mxu0 0
        %802 = vmatprep.subr.bf16.mxu0 0
        %803 = vmatpush2.bf16.msra.mxu0 0
        %804 = vmatprep.subr.bf16.mxu0 0
        %805 = vmatpush2.bf16.msra.mxu0 0
        %806 = vmatprep.subr.bf16.mxu0 0
        %807 = vmatpush2.bf16.msra.mxu0 0
        %808 = vmatprep.subr.bf16.mxu0 0
        %809 = vmatpush2.bf16.msra.mxu0 0
        %810 = vmatprep.subr.bf16.mxu0 0
        %811 = vmatpush2.bf16.msra.mxu0 0
        %812 = vmatprep.subr.bf16.mxu0 0
        %813 = vmatpush2.bf16.msra.mxu0 0
        %814 = vmatprep.subr.bf16.mxu0 0
        %815 = vmatpush2.bf16.msra.mxu0 0
        %816 = vmatprep.mubr.bf16.mxu0 0
        %817 = vmatmul.mubr.bf16.gmra.mxu0 %v779
        %v818 = vpop.f32.mrf.mxu0
        %v819 = vadd.f32 0.0, %v818
        %v820 = vpop.f32.mrf.mxu0
        %v821 = vpop.f32.mrf.mxu0
        %v822 = vpop.f32.mrf.mxu0
        %823 = vdwg.mxu0
        %v824 = vrcp.pop %v617
        %v825 = vrcp.pop %v620
        %v826 = vrcp.pop %v623
        %v827 = vrcp.pop %v626
        %v828 = vmul.f32 %v675, %v824
        %v829 = vmul.f32 %v723, %v825
        %v830 = vmul.f32 %v771, %v826
        %v831 = vmul.f32 %v819, %v827
        %833 = vrot.lane.b32.xlu0 %v829, 8
        %v834 = vpop.permute.xlu0 %833
        %837 = vrot.lane.b32.xlu0 %v830, 16
        %v838 = vpop.permute.xlu0 %837
        %841 = vrot.lane.b32.xlu0 %v831, 24
        %v842 = vpop.permute.xlu0 %841
        %v844 = vsel %vm386, %v828, %v834
        %vm845 = vcmask 130048
        %v846 = vsel %vm845, %v844, %v838
        %vm847 = vcmask 195584
        %v848 = vsel %vm847, %v846, %v842
        %v849 = vpack.c.bf16 %v848, %v848
        %v850 = vld [vmem:[%s3] sm:$0xf]
        %v851 = vld [vmem:[%s3 + $0x4] sm:$0xf]
        %v852 = vld [vmem:[%s3 + $0x8] sm:$0xf]
        %v853 = vld [vmem:[%s3 + $0xc] sm:$0xf]
        %v858 = vunpack.c.l.b16 %v850
        %v859 = vunpack.c.l.b16 %v851
        %v860 = vunpack.c.l.b16 %v852
        %v861 = vunpack.c.l.b16 %v853
        %v862 = vpack.c.b16 %v859, %v858
        %v863 = vpack.c.b16 %v861, %v860
        %v867 = vsel %vm293, %v849, 0
        %869 = vmatprep.subr.bf16.mxu0 0
        %870 = vmatpush1.bf16.msra.mxu0 0
        %871 = vmatprep.subr.bf16.mxu0 0
        %872 = vmatpush1.bf16.msra.mxu0 0
        %873 = vmatprep.subr.bf16.mxu0 0
        %874 = vmatpush1.bf16.msra.mxu0 0
        %875 = vmatprep.subr.bf16.mxu0 0
        %876 = vmatpush1.bf16.msra.mxu0 0
        %877 = vmatprep.subr.bf16.mxu0 0
        %878 = vmatpush1.bf16.msra.mxu0 0
        %879 = vmatprep.subr.bf16.mxu0 0
        %880 = vmatpush1.bf16.msra.mxu0 0
        %881 = vmatprep.subr.bf16.mxu0 0
        %882 = vmatpush1.bf16.msra.mxu0 %v863
        %883 = vmatprep.subr.bf16.mxu0 0
        %884 = vmatpush1.bf16.msra.mxu0 %v862
        %885 = vmatprep.subr.bf16.mxu0 0
        %886 = vmatpush2.bf16.msra.mxu0 0
        %887 = vmatprep.subr.bf16.mxu0 0
        %888 = vmatpush2.bf16.msra.mxu0 0
        %889 = vmatprep.subr.bf16.mxu0 0
        %890 = vmatpush2.bf16.msra.mxu0 0
        %891 = vmatprep.subr.bf16.mxu0 0
        %892 = vmatpush2.bf16.msra.mxu0 0
        %893 = vmatprep.subr.bf16.mxu0 0
        %894 = vmatpush2.bf16.msra.mxu0 0
        %895 = vmatprep.subr.bf16.mxu0 0
        %896 = vmatpush2.bf16.msra.mxu0 0
        %897 = vmatprep.subr.bf16.mxu0 0
        %898 = vmatpush2.bf16.msra.mxu0 0
        %899 = vmatprep.subr.bf16.mxu0 0
        %900 = vmatpush2.bf16.msra.mxu0 0
        %901 = vmatprep.mubr.bf16.mxu0 0
        %902 = vmatmul.mubr.bf16.gmra.mxu0 %v867
        %v903 = vpop.f32.mrf.mxu0
        %v904 = vadd.f32 0.0, %v903
        %v905 = vpop.f32.mrf.mxu0
        %v906 = vpop.f32.mrf.mxu0
        %v907 = vpop.f32.mrf.mxu0
        %908 = vdwg.mxu0
        %v909 = vadd.f32 %v290, %v904
        %v910 = vld [vmem:[%s4] sm:$0x1]
        %v911 = vmul.f32 %v909, %v909
        %v912 = vsel %vm293, %v911, 0.0
        %913 = vadd.xlane.f32.xlu0 %v912
        %v914 = vpop.xlane.xlu0 %913
        %v915 = vmul.f32 %v914, %v297
        %v916 = vadd.f32 %v915, 1e-05
        %v917 = vrsqrt.pop %v916
        %v918 = vmul.f32 %v909, %v917
        %v920 = vlaneseq
        %v921 = vshrl.u32 %v920, 7
        %v922 = vsub.s32 0, %v921
        %v923 = vrot.slane %v910, %v922
        %v925 = vmul.f32 %v918, %v923
        %v926 = vpack.c.bf16 %v925, %v925
        %v927 = vld [vmem:[#allocation2] sm:$0xf]
        %v928 = vld [vmem:[#allocation2 + $0x4] sm:$0xf]
        %v929 = vld [vmem:[#allocation2 + $0x8] sm:$0xf]
        %v930 = vld [vmem:[#allocation2 + $0xc] sm:$0xf]
        %v935 = vunpack.c.l.b16 %v927
        %v936 = vunpack.c.l.b16 %v928
        %v937 = vunpack.c.l.b16 %v929
        %v938 = vunpack.c.l.b16 %v930
        %v939 = vpack.c.b16 %v936, %v935
        %v940 = vpack.c.b16 %v938, %v937
        %v944 = vsel %vm293, %v926, 0
        %946 = vmatprep.subr.bf16.mxu0 0
        %947 = vmatpush1.bf16.msra.mxu0 0
        %948 = vmatprep.subr.bf16.mxu0 0
        %949 = vmatpush1.bf16.msra.mxu0 0
        %950 = vmatprep.subr.bf16.mxu0 0
        %951 = vmatpush1.bf16.msra.mxu0 0
        %952 = vmatprep.subr.bf16.mxu0 0
        %953 = vmatpush1.bf16.msra.mxu0 0
        %954 = vmatprep.subr.bf16.mxu0 0
        %955 = vmatpush1.bf16.msra.mxu0 0
        %956 = vmatprep.subr.bf16.mxu0 0
        %957 = vmatpush1.bf16.msra.mxu0 0
        %958 = vmatprep.subr.bf16.mxu0 0
        %959 = vmatpush1.bf16.msra.mxu0 %v940
        %960 = vmatprep.subr.bf16.mxu0 0
        %961 = vmatpush1.bf16.msra.mxu0 %v939
        %962 = vmatprep.subr.bf16.mxu0 0
        %963 = vmatpush2.bf16.msra.mxu0 0
        %964 = vmatprep.subr.bf16.mxu0 0
        %965 = vmatpush2.bf16.msra.mxu0 0
        %966 = vmatprep.subr.bf16.mxu0 0
        %967 = vmatpush2.bf16.msra.mxu0 0
        %968 = vmatprep.subr.bf16.mxu0 0
        %969 = vmatpush2.bf16.msra.mxu0 0
        %970 = vmatprep.subr.bf16.mxu0 0
        %971 = vmatpush2.bf16.msra.mxu0 0
        %972 = vmatprep.subr.bf16.mxu0 0
        %973 = vmatpush2.bf16.msra.mxu0 0
        %974 = vmatprep.subr.bf16.mxu0 0
        %975 = vmatpush2.bf16.msra.mxu0 0
        %976 = vmatprep.subr.bf16.mxu0 0
        %977 = vmatpush2.bf16.msra.mxu0 0
        %978 = vmatprep.mubr.bf16.mxu0 0
        %979 = vmatmul.mubr.bf16.gmra.mxu0 %v944
        %v980 = vpop.f32.mrf.mxu0
        %v981 = vadd.f32 0.0, %v980
        %v982 = vpop.f32.mrf.mxu0
        %v983 = vpop.f32.mrf.mxu0
        %v984 = vpop.f32.mrf.mxu0
        %985 = vdwg.mxu0
        %v986 = vmul.f32 %v981, 0.5
        %v987 = vmul.f32 %v981, 0.044715
        %v988 = vmul.f32 %v987, %v981
        %v989 = vmul.f32 %v988, %v981
        %v990 = vadd.f32 %v981, %v989
        %v991 = vmul.f32 %v990, 0.7978846
        %v992 = vtanh.pop %v991
        %v993 = vadd.f32 %v992, 1.0
        %v994 = vmul.f32 %v986, %v993
        %v995 = vpack.c.bf16 %v994, %v994
        %v996 = vld [vmem:[%s6] sm:$0xf]
        %v997 = vld [vmem:[%s6 + $0x4] sm:$0xf]
        %v998 = vld [vmem:[%s6 + $0x8] sm:$0xf]
        %v999 = vld [vmem:[%s6 + $0xc] sm:$0xf]
        %v1000 = vld [vmem:[%s6 + $0x10] sm:$0xf]
        %v1001 = vld [vmem:[%s6 + $0x14] sm:$0xf]
        %v1002 = vld [vmem:[%s6 + $0x18] sm:$0xf]
        %v1003 = vld [vmem:[%s6 + $0x1c] sm:$0xf]
        %v1012 = vunpack.c.l.b16 %v996
        %v1013 = vunpack.c.l.b16 %v997
        %v1014 = vunpack.c.l.b16 %v998
        %v1015 = vunpack.c.l.b16 %v999
        %v1016 = vunpack.c.l.b16 %v1000
        %v1017 = vunpack.c.l.b16 %v1001
        %v1018 = vunpack.c.l.b16 %v1002
        %v1019 = vunpack.c.l.b16 %v1003
        %v1020 = vpack.c.b16 %v1013, %v1012
        %v1021 = vpack.c.b16 %v1015, %v1014
        %v1022 = vpack.c.b16 %v1017, %v1016
        %v1023 = vpack.c.b16 %v1019, %v1018
        %vm1028 = vcmask 523264
        %v1030 = vsel %vm1028, %v995, 0
        %1032 = vmatprep.subr.bf16.mxu0 0
        %1033 = vmatpush1.bf16.msra.mxu0 0
        %1034 = vmatprep.subr.bf16.mxu0 0
        %1035 = vmatpush1.bf16.msra.mxu0 0
        %1036 = vmatprep.subr.bf16.mxu0 0
        %1037 = vmatpush1.bf16.msra.mxu0 0
        %1038 = vmatprep.subr.bf16.mxu0 0
        %1039 = vmatpush1.bf16.msra.mxu0 0
        %1040 = vmatprep.subr.bf16.mxu0 0
        %1041 = vmatpush1.bf16.msra.mxu0 %v1023
        %1042 = vmatprep.subr.bf16.mxu0 0
        %1043 = vmatpush1.bf16.msra.mxu0 %v1022
        %1044 = vmatprep.subr.bf16.mxu0 0
        %1045 = vmatpush1.bf16.msra.mxu0 %v1021
        %1046 = vmatprep.subr.bf16.mxu0 0
        %1047 = vmatpush1.bf16.msra.mxu0 %v1020
        %1048 = vmatprep.subr.bf16.mxu0 0
        %1049 = vmatpush2.bf16.msra.mxu0 0
        %1050 = vmatprep.subr.bf16.mxu0 0
        %1051 = vmatpush2.bf16.msra.mxu0 0
        %1052 = vmatprep.subr.bf16.mxu0 0
        %1053 = vmatpush2.bf16.msra.mxu0 0
        %1054 = vmatprep.subr.bf16.mxu0 0
        %1055 = vmatpush2.bf16.msra.mxu0 0
        %1056 = vmatprep.subr.bf16.mxu0 0
        %1057 = vmatpush2.bf16.msra.mxu0 0
        %1058 = vmatprep.subr.bf16.mxu0 0
        %1059 = vmatpush2.bf16.msra.mxu0 0
        %1060 = vmatprep.subr.bf16.mxu0 0
        %1061 = vmatpush2.bf16.msra.mxu0 0
        %1062 = vmatprep.subr.bf16.mxu0 0
        %1063 = vmatpush2.bf16.msra.mxu0 0
        %1064 = vmatprep.mubr.bf16.mxu0 0
        %1065 = vmatmul.mubr.bf16.gmra.mxu0 %v1030
        %v1066 = vpop.f32.mrf.mxu0
        %v1067 = vadd.f32 0.0, %v1066
        %v1068 = vpop.f32.mrf.mxu0
        %v1069 = vpop.f32.mrf.mxu0
        %v1070 = vpop.f32.mrf.mxu0
        %1071 = vdwg.mxu0
        %v1072 = vadd.f32 %v909, %v1067
        %1073 = vst.msk [vmem:[%s284] sm:$0xff] %vm293, %v1072
        %s1074 = sand.u32 %s182, 1
        %s1075 = scalar_lea.sflag [#allocation4], %s1074
        %s1076 = sand.u32 %s182, 1
        %s1077 = smul.addr %s1076, 8
        %s1078 = scalar_lea.vmem [#allocation5], %s1077
        // Predicated region
        $region53: #{tpu_custom_call.1} parent=47 // pred_check
          %p1079 = pneg %p192
        $region54: #{tpu_custom_call.1} parent=47 // pred_check_branch
          %1081 = sbr.rel (%p1079) target = $region56
        $region55: #{tpu_custom_call.1} parent=47 // pred_region
          %s1083 = ssub.s32 128, 128
          %1084 = vsyncadd %s1075, %s1083
          %s1085 = smul.addr %s22, 128
          %s1086 = scalar_lea.hbm %s7, %s1085
          %s1088 = sshll.u32 %s1078, 4
          %s1089 = int_to_ptr.vmem [resolvable:$true] %s1088
          %1091 = dma.vmem_to_hbm [thread:$0]  %s1089, 128, %s1086, %s1075
        $region56: #{tpu_custom_call.1} parent=47 // pred_fallthru
          _
      $region48: #{tpu_custom_call.1} parent=5 // pred_fallthru
        _
      %p1092 = scmp.le.s32.totalorder 2, %s17
      // Predicated region
      $region57: #{tpu_custom_call.1} parent=5 // pred_check
        %p1093 = pneg %p1092
      $region58: #{tpu_custom_call.1} parent=5 // pred_check_branch
        %1095 = sbr.rel (%p1093) target = $region60
      $region59: #{tpu_custom_call.1} parent=5 // pred_region
        %s1096 = ssub.s32 %s17, 2
        // Predicated region
        $region61: #{tpu_custom_call.1} parent=59 // pred_check
          %p1097 = pneg %p198
        $region62: #{tpu_custom_call.1} parent=59 // pred_check_branch
          %1099 = sbr.rel (%p1097) target = $region64
        $region63: #{tpu_custom_call.1} parent=59 // pred_region
          %s1100 = sand.u32 %s183, 1
          %s1101 = scalar_lea.sflag [#allocation4], %s1100
          %s1102 = sand.u32 %s183, 1
          %s1103 = smul.addr %s1102, 8
          %s1104 = scalar_lea.vmem [#allocation5], %s1103
          %1105 = dma.done %s1101, 128
        $region64: #{tpu_custom_call.1} parent=59 // pred_fallthru
          _
      $region60: #{tpu_custom_call.1} parent=5 // pred_fallthru
        _
    $region6: #{tpu_custom_call.1} parent=1 // loop_footer
      %s21 = sadd.s32 1, %s17
    $region7: #{tpu_custom_call.1} parent=1 // loop_footer_branch
      %16 = sbr.rel target = $region3
    $region8: #{tpu_custom_call.1} parent=1 // loop_exit
      _
    %1106 = vsyncpa [#allocation3], 1
    %s1107 = scalar_lea.sflag [#allocation3], 1
    %1108 = vsyncpa %s1107, 1
    %1109 = vsyncpa [#allocation4], 1
    %s1110 = scalar_lea.sflag [#allocation4], 1
    %1111 = vsyncpa %s1110, 1

</llo_original>
